<compile_context>
chip_gen: v7x
topology: tpu7x:2x2x1
jax: 0.10.0
libtpu: 0.0.40
codegen_flags: <defaults>
</compile_context>

<pallas_src>
import functools

import jax
import jax.numpy as jnp
from jax.experimental import pallas as pl
from jax.experimental.pallas import tpu as pltpu


def _pick_row_block(Ho, Wo, target_rows=256):
    """Largest divisor TH of Ho with TH*Wo <= ~target_rows accumulator rows and
    TH*Wo a multiple of 16 (bf16 sublane tile) so the flatten reshape is free."""
    legal = [t for t in range(1, Ho + 1)
             if Ho % t == 0 and (t == Ho or (t * Wo) % 16 == 0)]
    small = [t for t in legal if t * Wo <= max(Wo, target_rows)]
    return max(small) if small else min(legal)


def _sepconv_kernel(x_ref, w_ref, o_ref, *, TH, Wo, KH, KW, Cin, Cout_pad):
    """Grid = (batch, row-block).

    x_ref : (1, Hp, Wp, Cin)         zero-padded bf16 NHWC input (full image, resident)
    w_ref : (KH*KW, Cin, Cout_pad)   fused depthwise*pointwise weights (bf16)
    o_ref : (1, TH*Wo, Cout_pad)     lane-dense bf16 output row block
    """
    rb = pl.program_id(1)
    row0 = pl.multiple_of(rb * TH, TH)
    THK = TH + KH - 1

    # Rows needed by this output row block (includes the KH-1 halo). Slicing the leading
    # (non-vreg) axis at a dynamic offset is tile-aligned and cheap.
    xb = x_ref[0, pl.ds(row0, THK), :, :]                     # (THK, Wp, Cin) bf16

    # One sublane-unaligned column shift per kw (KW total), reused across all kh.
    shifted = [xb[:, kw:kw + Wo, :] for kw in range(KW)]      # each (THK, Wo, Cin)
    # Tap t = kh*KW + kw ; row slice + flatten are ~free when Wo % 16 == 0.
    taps = [shifted[kw][kh:kh + TH].reshape(TH * Wo, Cin)
            for kh in range(KH) for kw in range(KW)]

    if Cin % 128 == 0:
        # Lane-aligned im2col: one K = KH*KW*Cin matmul fills the MXU (256-deep K on
        # v6e/v7x) and keeps accumulation inside the MXU pipeline.
        lhs = jnp.concatenate(taps, axis=-1)                  # (TH*Wo, KH*KW*Cin)
        rhs = w_ref[...].reshape(KH * KW * Cin, Cout_pad)
        acc = jnp.dot(lhs, rhs, preferred_element_type=jnp.float32)
    else:
        # Small Cin: per-tap dots, back-to-back on one f32 accumulator (MRB-friendly on v7x).
        acc = jnp.zeros((TH * Wo, Cout_pad), jnp.float32)
        for t, tap in enumerate(taps):
            acc = acc + jnp.dot(tap, w_ref[t], preferred_element_type=jnp.float32)

    o_ref[0] = acc.astype(o_ref.dtype)                        # unmasked, lane-dense store


def separable_conv2d(x_nchw, dw_weight, pw_weight, *, stride=1, padding=1, dilation=1):
    """x_nchw: (N, Cin, H, W); dw_weight: (Cin, 1, KH, KW); pw_weight: (Cout, Cin, 1, 1)."""
    if stride != 1 or dilation != 1:
        raise NotImplementedError("kernel assumes stride=1, dilation=1 (mini_xception usage)")
    N, Cin, H, W = x_nchw.shape
    KH, KW = dw_weight.shape[2], dw_weight.shape[3]
    Cout = pw_weight.shape[0]
    Ho = H + 2 * padding - KH + 1
    Wo = W + 2 * padding - KW + 1
    Hp = H + 2 * padding
    Wp = W + 2 * padding
    LANES = 128
    Cout_pad = -(-Cout // LANES) * LANES

    # NCHW -> NHWC (channels on lanes) + spatial zero-pad + bf16 cast: one fused XLA pass,
    # halving input DMA bytes vs feeding f32 and removing in-kernel padding stores.
    x = jnp.transpose(x_nchw, (0, 2, 3, 1)).astype(jnp.bfloat16)
    x = jnp.pad(x, ((0, 0), (padding, padding), (padding, padding), (0, 0)))

    # Fuse depthwise into pointwise: Wc[kh,kw,cin,cout] = dw[kh,kw,cin] * pw[cin,cout];
    # zero-pad Cout to a lane-dense width; feed the MXU in bf16 (f32 accumulate in-kernel).
    # NOTE: fusion is exact only because nothing sits between conv1 and pointwise.
    dw = jnp.transpose(dw_weight[:, 0, :, :], (1, 2, 0))              # (KH, KW, Cin)
    pw = jnp.transpose(pw_weight[:, :, 0, 0], (1, 0))                 # (Cin, Cout)
    wc = (dw[:, :, :, None] * pw[None, None, :, :]).reshape(KH * KW, Cin, Cout)
    wc = jnp.pad(wc, ((0, 0), (0, 0), (0, Cout_pad - Cout))).astype(jnp.bfloat16)

    TH = _pick_row_block(Ho, Wo)            # rows per output block (accumulator ~256 rows)
    NRB = Ho // TH

    kernel = functools.partial(_sepconv_kernel, TH=TH, Wo=Wo, KH=KH, KW=KW,
                               Cin=Cin, Cout_pad=Cout_pad)

    in_bytes = N * Hp * Wp * Cin * 2
    w_bytes = KH * KW * Cin * Cout_pad * 2
    out_bytes = N * Ho * Wo * Cout_pad * 2
    flops = 2 * N * Ho * Wo * KH * KW * Cin * Cout_pad

    out = pl.pallas_call(
        kernel,
        out_shape=jax.ShapeDtypeStruct((N, Ho * Wo, Cout_pad), jnp.bfloat16),
        grid_spec=pltpu.PrefetchScalarGridSpec(
            num_scalar_prefetch=0,
            grid=(N, NRB),                   # batch outer, row blocks inner (input reused)
            in_specs=[
                pl.BlockSpec((1, Hp, Wp, Cin), lambda n, rb: (n, 0, 0, 0)),
                pl.BlockSpec((KH * KW, Cin, Cout_pad), lambda n, rb: (0, 0, 0)),
            ],
            out_specs=pl.BlockSpec((1, TH * Wo, Cout_pad), lambda n, rb: (n, rb, 0)),
        ),
        compiler_params=pltpu.CompilerParams(
            dimension_semantics=("parallel", "parallel"),
            vmem_limit_bytes=32 * 1024 * 1024),
        cost_estimate=pl.CostEstimate(flops=flops, transcendentals=0,
                                      bytes_accessed=in_bytes + w_bytes + out_bytes),
    )(x, wc)

    # (N, Ho*Wo, Cout_pad) -> (N, Cout, Ho, Wo): strip lane pad, cast back, restore NCHW
    # (all fused into one XLA pass with the final transpose).
    out = out[:, :, :Cout].astype(x_nchw.dtype).reshape(N, Ho, Wo, Cout)
    return jnp.transpose(out, (0, 3, 1, 2))


def _reference(x_nchw, dw_weight, pw_weight, *, padding=1):
    """Pure-JAX reference matching PyTorch Conv2d semantics (all-f32)."""
    Cin = x_nchw.shape[1]
    depth = jax.lax.conv_general_dilated(
        x_nchw, dw_weight, window_strides=(1, 1),
        padding=[(padding, padding), (padding, padding)],
        dimension_numbers=("NCHW", "OIHW", "NCHW"),
        feature_group_count=Cin)
    point = jax.lax.conv_general_dilated(
        depth, pw_weight, window_strides=(1, 1), padding=[(0, 0), (0, 0)],
        dimension_numbers=("NCHW", "OIHW", "NCHW"))
    return point


if __name__ == "__main__":
    key = jax.random.PRNGKey(0)
    k_x, k_dw, k_pw = jax.random.split(key, 3)

    N, Cin, Cout, H, W = 2, 4, 8, 16, 16
    KH = KW = 3
    padding = 1

    x = jax.random.normal(k_x, (N, Cin, H, W), dtype=jnp.float32)
    # Shapes follow nn.Conv2d in __init__:
    #   conv1.weight    : (Cin, 1, KH, KW)   (groups=Cin depthwise)
    #   pointwise.weight: (Cout, Cin, 1, 1)
    dw_weight = jax.random.normal(k_dw, (Cin, 1, KH, KW), dtype=jnp.float32) * 0.1
    pw_weight = jax.random.normal(k_pw, (Cout, Cin, 1, 1), dtype=jnp.float32) * 0.1

    out = separable_conv2d(x, dw_weight, pw_weight, padding=padding)
    out = jax.block_until_ready(out)

    ref = _reference(x, dw_weight, pw_weight, padding=padding)
    assert out.shape == ref.shape == (N, Cout, H, W)
    # bf16 activations/weights/output container (f32 MXU accumulate) -> bf16-class tolerance.
    assert jnp.allclose(out, ref, atol=2e-2, rtol=2e-2), "mismatch vs reference conv"

    print("KERNEL_OK")
</pallas_src>

<mosaic_0001>
module attributes {stable_mosaic.version = 11 : i64} {
  func.func @_sepconv_kernel(%arg0: i32, %arg1: i32, %arg2: memref<1x18x18x4xbf16, #tpu.memory_space<vmem>>, %arg3: memref<9x4x128xbf16, #tpu.memory_space<vmem>>, %arg4: memref<1x256x128xbf16, #tpu.memory_space<vmem>>) attributes {dimension_semantics = [#tpu.dimension_semantics<parallel>, #tpu.dimension_semantics<parallel>], iteration_bounds = array<i64: 2, 1>, scalar_prefetch = 0 : i64, scratch_operands = 0 : i64, tpu.core_type = #tpu.core_type<tc>, window_params = [{transform_indices = @transform_0, window_bounds = array<i64: 1, 18, 18, 4>}, {pipeline_mode = #tpu.pipeline_mode<synchronous>, transform_indices = @transform_1, window_bounds = array<i64: 9, 4, 128>}, {transform_indices = @transform_2, window_bounds = array<i64: 1, 256, 128>}]} {
    %c16_i32 = arith.constant 16 : i32
    %0 = arith.muli %arg1, %c16_i32 : i32
    %1 = tpu.assume_multiple %0, 16 : i32
    %c0 = arith.constant 0 : index
    %2 = arith.index_cast %1 : i32 to index
    %c0_0 = arith.constant 0 : index
    %c0_1 = arith.constant 0 : index
    %3 = vector.load %arg2[%c0, %2, %c0_0, %c0_1] : memref<1x18x18x4xbf16, #tpu.memory_space<vmem>>, vector<1x18x18x4xbf16>
    %4 = vector.shape_cast %3 : vector<1x18x18x4xbf16> to vector<18x18x4xbf16>
    %5 = vector.extract_strided_slice %4 {offsets = [0, 0, 0], sizes = [18, 16, 4], strides = [1, 1, 1]} : vector<18x18x4xbf16> to vector<18x16x4xbf16>
    %6 = vector.extract_strided_slice %4 {offsets = [0, 1, 0], sizes = [18, 16, 4], strides = [1, 1, 1]} : vector<18x18x4xbf16> to vector<18x16x4xbf16>
    %7 = vector.extract_strided_slice %4 {offsets = [0, 2, 0], sizes = [18, 16, 4], strides = [1, 1, 1]} : vector<18x18x4xbf16> to vector<18x16x4xbf16>
    %8 = vector.extract_strided_slice %5 {offsets = [0, 0, 0], sizes = [16, 16, 4], strides = [1, 1, 1]} : vector<18x16x4xbf16> to vector<16x16x4xbf16>
    %9 = vector.shape_cast %8 : vector<16x16x4xbf16> to vector<256x4xbf16>
    %10 = vector.extract_strided_slice %6 {offsets = [0, 0, 0], sizes = [16, 16, 4], strides = [1, 1, 1]} : vector<18x16x4xbf16> to vector<16x16x4xbf16>
    %11 = vector.shape_cast %10 : vector<16x16x4xbf16> to vector<256x4xbf16>
    %12 = vector.extract_strided_slice %7 {offsets = [0, 0, 0], sizes = [16, 16, 4], strides = [1, 1, 1]} : vector<18x16x4xbf16> to vector<16x16x4xbf16>
    %13 = vector.shape_cast %12 : vector<16x16x4xbf16> to vector<256x4xbf16>
    %14 = vector.extract_strided_slice %5 {offsets = [1, 0, 0], sizes = [16, 16, 4], strides = [1, 1, 1]} : vector<18x16x4xbf16> to vector<16x16x4xbf16>
    %15 = vector.shape_cast %14 : vector<16x16x4xbf16> to vector<256x4xbf16>
    %16 = vector.extract_strided_slice %6 {offsets = [1, 0, 0], sizes = [16, 16, 4], strides = [1, 1, 1]} : vector<18x16x4xbf16> to vector<16x16x4xbf16>
    %17 = vector.shape_cast %16 : vector<16x16x4xbf16> to vector<256x4xbf16>
    %18 = vector.extract_strided_slice %7 {offsets = [1, 0, 0], sizes = [16, 16, 4], strides = [1, 1, 1]} : vector<18x16x4xbf16> to vector<16x16x4xbf16>
    %19 = vector.shape_cast %18 : vector<16x16x4xbf16> to vector<256x4xbf16>
    %20 = vector.extract_strided_slice %5 {offsets = [2, 0, 0], sizes = [16, 16, 4], strides = [1, 1, 1]} : vector<18x16x4xbf16> to vector<16x16x4xbf16>
    %21 = vector.shape_cast %20 : vector<16x16x4xbf16> to vector<256x4xbf16>
    %22 = vector.extract_strided_slice %6 {offsets = [2, 0, 0], sizes = [16, 16, 4], strides = [1, 1, 1]} : vector<18x16x4xbf16> to vector<16x16x4xbf16>
    %23 = vector.shape_cast %22 : vector<16x16x4xbf16> to vector<256x4xbf16>
    %24 = vector.extract_strided_slice %7 {offsets = [2, 0, 0], sizes = [16, 16, 4], strides = [1, 1, 1]} : vector<18x16x4xbf16> to vector<16x16x4xbf16>
    %25 = vector.shape_cast %24 : vector<16x16x4xbf16> to vector<256x4xbf16>
    %cst = arith.constant 0.000000e+00 : f32
    %26 = vector.broadcast %cst : f32 to vector<256x128xf32>
    %c0_2 = arith.constant 0 : index
    %c0_3 = arith.constant 0 : index
    %c0_4 = arith.constant 0 : index
    %27 = vector.load %arg3[%c0_2, %c0_3, %c0_4] : memref<9x4x128xbf16, #tpu.memory_space<vmem>>, vector<1x4x128xbf16>
    %28 = vector.shape_cast %27 : vector<1x4x128xbf16> to vector<4x128xbf16>
    %cst_5 = arith.constant dense<0.000000e+00> : vector<256x128xf32>
    %29 = tpu.matmul %9, %28, %cst_5 {dimension_numbers = #tpu.dot_dimension_numbers<[1], [0], [0], [1], [0, 0, 1, 1], [], []>} : vector<256x4xbf16>, vector<4x128xbf16>, vector<256x128xf32> -> vector<256x128xf32>
    %30 = arith.addf %26, %29 : vector<256x128xf32>
    %c1 = arith.constant 1 : index
    %c0_6 = arith.constant 0 : index
    %c0_7 = arith.constant 0 : index
    %31 = vector.load %arg3[%c1, %c0_6, %c0_7] : memref<9x4x128xbf16, #tpu.memory_space<vmem>>, vector<1x4x128xbf16>
    %32 = vector.shape_cast %31 : vector<1x4x128xbf16> to vector<4x128xbf16>
    %cst_8 = arith.constant dense<0.000000e+00> : vector<256x128xf32>
    %33 = tpu.matmul %11, %32, %cst_8 {dimension_numbers = #tpu.dot_dimension_numbers<[1], [0], [0], [1], [0, 0, 1, 1], [], []>} : vector<256x4xbf16>, vector<4x128xbf16>, vector<256x128xf32> -> vector<256x128xf32>
    %34 = arith.addf %30, %33 : vector<256x128xf32>
    %c2 = arith.constant 2 : index
    %c0_9 = arith.constant 0 : index
    %c0_10 = arith.constant 0 : index
    %35 = vector.load %arg3[%c2, %c0_9, %c0_10] : memref<9x4x128xbf16, #tpu.memory_space<vmem>>, vector<1x4x128xbf16>
    %36 = vector.shape_cast %35 : vector<1x4x128xbf16> to vector<4x128xbf16>
    %cst_11 = arith.constant dense<0.000000e+00> : vector<256x128xf32>
    %37 = tpu.matmul %13, %36, %cst_11 {dimension_numbers = #tpu.dot_dimension_numbers<[1], [0], [0], [1], [0, 0, 1, 1], [], []>} : vector<256x4xbf16>, vector<4x128xbf16>, vector<256x128xf32> -> vector<256x128xf32>
    %38 = arith.addf %34, %37 : vector<256x128xf32>
    %c3 = arith.constant 3 : index
    %c0_12 = arith.constant 0 : index
    %c0_13 = arith.constant 0 : index
    %39 = vector.load %arg3[%c3, %c0_12, %c0_13] : memref<9x4x128xbf16, #tpu.memory_space<vmem>>, vector<1x4x128xbf16>
    %40 = vector.shape_cast %39 : vector<1x4x128xbf16> to vector<4x128xbf16>
    %cst_14 = arith.constant dense<0.000000e+00> : vector<256x128xf32>
    %41 = tpu.matmul %15, %40, %cst_14 {dimension_numbers = #tpu.dot_dimension_numbers<[1], [0], [0], [1], [0, 0, 1, 1], [], []>} : vector<256x4xbf16>, vector<4x128xbf16>, vector<256x128xf32> -> vector<256x128xf32>
    %42 = arith.addf %38, %41 : vector<256x128xf32>
    %c4 = arith.constant 4 : index
    %c0_15 = arith.constant 0 : index
    %c0_16 = arith.constant 0 : index
    %43 = vector.load %arg3[%c4, %c0_15, %c0_16] : memref<9x4x128xbf16, #tpu.memory_space<vmem>>, vector<1x4x128xbf16>
    %44 = vector.shape_cast %43 : vector<1x4x128xbf16> to vector<4x128xbf16>
    %cst_17 = arith.constant dense<0.000000e+00> : vector<256x128xf32>
    %45 = tpu.matmul %17, %44, %cst_17 {dimension_numbers = #tpu.dot_dimension_numbers<[1], [0], [0], [1], [0, 0, 1, 1], [], []>} : vector<256x4xbf16>, vector<4x128xbf16>, vector<256x128xf32> -> vector<256x128xf32>
    %46 = arith.addf %42, %45 : vector<256x128xf32>
    %c5 = arith.constant 5 : index
    %c0_18 = arith.constant 0 : index
    %c0_19 = arith.constant 0 : index
    %47 = vector.load %arg3[%c5, %c0_18, %c0_19] : memref<9x4x128xbf16, #tpu.memory_space<vmem>>, vector<1x4x128xbf16>
    %48 = vector.shape_cast %47 : vector<1x4x128xbf16> to vector<4x128xbf16>
    %cst_20 = arith.constant dense<0.000000e+00> : vector<256x128xf32>
    %49 = tpu.matmul %19, %48, %cst_20 {dimension_numbers = #tpu.dot_dimension_numbers<[1], [0], [0], [1], [0, 0, 1, 1], [], []>} : vector<256x4xbf16>, vector<4x128xbf16>, vector<256x128xf32> -> vector<256x128xf32>
    %50 = arith.addf %46, %49 : vector<256x128xf32>
    %c6 = arith.constant 6 : index
    %c0_21 = arith.constant 0 : index
    %c0_22 = arith.constant 0 : index
    %51 = vector.load %arg3[%c6, %c0_21, %c0_22] : memref<9x4x128xbf16, #tpu.memory_space<vmem>>, vector<1x4x128xbf16>
    %52 = vector.shape_cast %51 : vector<1x4x128xbf16> to vector<4x128xbf16>
    %cst_23 = arith.constant dense<0.000000e+00> : vector<256x128xf32>
    %53 = tpu.matmul %21, %52, %cst_23 {dimension_numbers = #tpu.dot_dimension_numbers<[1], [0], [0], [1], [0, 0, 1, 1], [], []>} : vector<256x4xbf16>, vector<4x128xbf16>, vector<256x128xf32> -> vector<256x128xf32>
    %54 = arith.addf %50, %53 : vector<256x128xf32>
    %c7 = arith.constant 7 : index
    %c0_24 = arith.constant 0 : index
    %c0_25 = arith.constant 0 : index
    %55 = vector.load %arg3[%c7, %c0_24, %c0_25] : memref<9x4x128xbf16, #tpu.memory_space<vmem>>, vector<1x4x128xbf16>
    %56 = vector.shape_cast %55 : vector<1x4x128xbf16> to vector<4x128xbf16>
    %cst_26 = arith.constant dense<0.000000e+00> : vector<256x128xf32>
    %57 = tpu.matmul %23, %56, %cst_26 {dimension_numbers = #tpu.dot_dimension_numbers<[1], [0], [0], [1], [0, 0, 1, 1], [], []>} : vector<256x4xbf16>, vector<4x128xbf16>, vector<256x128xf32> -> vector<256x128xf32>
    %58 = arith.addf %54, %57 : vector<256x128xf32>
    %c8 = arith.constant 8 : index
    %c0_27 = arith.constant 0 : index
    %c0_28 = arith.constant 0 : index
    %59 = vector.load %arg3[%c8, %c0_27, %c0_28] : memref<9x4x128xbf16, #tpu.memory_space<vmem>>, vector<1x4x128xbf16>
    %60 = vector.shape_cast %59 : vector<1x4x128xbf16> to vector<4x128xbf16>
    %cst_29 = arith.constant dense<0.000000e+00> : vector<256x128xf32>
    %61 = tpu.matmul %25, %60, %cst_29 {dimension_numbers = #tpu.dot_dimension_numbers<[1], [0], [0], [1], [0, 0, 1, 1], [], []>} : vector<256x4xbf16>, vector<4x128xbf16>, vector<256x128xf32> -> vector<256x128xf32>
    %62 = arith.addf %58, %61 : vector<256x128xf32>
    %63 = arith.truncf %62 : vector<256x128xf32> to vector<256x128xbf16>
    %c0_30 = arith.constant 0 : index
    %c0_31 = arith.constant 0 : index
    %c0_32 = arith.constant 0 : index
    %64 = vector.load %arg4[%c0_30, %c0_31, %c0_32] : memref<1x256x128xbf16, #tpu.memory_space<vmem>>, vector<1x256x128xbf16>
    %65 = vector.shape_cast %64 : vector<1x256x128xbf16> to vector<256x128xbf16>
    %66 = vector.shape_cast %63 : vector<256x128xbf16> to vector<1x256x128xbf16>
    tpu.vector_store %arg4[%c0_30, %c0_31, %c0_32], %66 {strides = array<i32>} : memref<1x256x128xbf16, #tpu.memory_space<vmem>>, vector<1x256x128xbf16>,
    return
  }
  func.func @transform_0(%arg0: i32, %arg1: i32) -> (i32, i32, i32, i32) {
    %c0_i32 = arith.constant 0 : i32
    %c0_i32_0 = arith.constant 0 : i32
    %c0_i32_1 = arith.constant 0 : i32
    %c0_i32_2 = arith.constant 0 : i32
    return %arg0, %c0_i32, %c0_i32_0, %c0_i32_1 : i32, i32, i32, i32
  }
  func.func @transform_1(%arg0: i32, %arg1: i32) -> (i32, i32, i32) {
    %c0_i32 = arith.constant 0 : i32
    %c0_i32_0 = arith.constant 0 : i32
    %c0_i32_1 = arith.constant 0 : i32
    %c0_i32_2 = arith.constant 0 : i32
    return %c0_i32, %c0_i32_0, %c0_i32_1 : i32, i32, i32
  }
  func.func @transform_2(%arg0: i32, %arg1: i32) -> (i32, i32, i32) {
    %c0_i32 = arith.constant 0 : i32
    %c0_i32_0 = arith.constant 0 : i32
    return %arg0, %arg1, %c0_i32 : i32, i32, i32
  }
}

</mosaic_0001>

<llo_original>
// kernel: tpu_custom_call.1
$region0: #{tpu_custom_call.1}
  #allocation0 [shape = 'u32[]', space=smem, size = 0x4, offset = 0x4, fixed_abs, tag = 'smem constant byte address 0x4 - core index']
  #allocation1 [shape = 'u32[144,128]{1,0:T(1,128)}', space=vmem, size = 0x12000, scoped, tag = 'internal scratch']
  %s0 = inlined_call_operand.vmem [shape: bf16[2,18,18,4], index: 0, kind: input, shape index: {}]
  %s1 = inlined_call_operand.vmem [shape: bf16[9,4,128], index: 1, kind: input, shape index: {}]
  %s2 = inlined_call_operand.hbm [shape: bf16[2,256,128], index: 2, kind: output, shape index: {}]
  %s3 = sld [smem:[#allocation0]]
  $region41: #{tpu_custom_call.1} parent=0
    _
  %s5 = ssub.s32 1, %s3
  %s6 = scalar_select 0, %s5, %s3
  $region1: #{tpu_custom_call.1} parent=0
    #allocation2 [shape = 'u8[131072]{0}', space=vmem, size = 0x20000, scoped, tag = 'output window, operand 0']
    #allocation3 [shape = 's32[2]{0}', space=sflag, size = 0x8, scoped, tag = 'scoped memory for tpu_custom_call.1']
    %7 = vsyncpa [#allocation3], 0
    %s8 = scalar_lea.sflag [#allocation3], 1
    %9 = vsyncpa %s8, 0
    loop: start=0, step=1, limit=4
    $region2: #{tpu_custom_call.1} parent=1 // loop_pre_header
      _
    $region3: #{tpu_custom_call.1} parent=1 // loop_header
      %s11 = sphi 0, %s15
      %p12 = scmp.ge.s32.totalorder %s11, 4
      %s18 = sphi 0, %s30
      %s19 = sphi 0, %s26
      %s20 = sphi 0, %s18
      %s21 = sphi 0, %s19
      %s22 = sphi 0, %s20
      %s23 = sphi 0, %s21
      %s33 = sphi 0, %s35
      %s36 = sphi 0, %s33
      %s37 = sphi 0, %s36
      %s53 = sphi 0, %s37
      %s57 = sphi 0, %s57
      %s59 = sphi 0, %s57
      %s60 = sphi 0, %s59
      %s74 = sphi 0, %s60
      %s82 = sphi 0, %s84
      %s85 = sphi 0, %s82
      %s86 = sphi 0, %s85
      %s102 = sphi 0, %s86
    $region4: #{tpu_custom_call.1} parent=1 // loop_header_branch
      %14 = sbr.rel (%p12) target = $region8
    $region5: #{tpu_custom_call.1} parent=1 // loop_body
      %s16 = ssub.s32 %s11, 1
      %s17 = ssub.s32 %s11, 2
      %s24 = sadd.s32 1, %s19
      %p25 = scmp.ge.s32.totalorder %s24, 1
      %s26 = scalar_select %p25, 0, %s24
      %s27 = sadd.s32 1, %s18
      %s28 = scalar_select %p25, %s27, %s18
      %p29 = scmp.ge.s32.totalorder %s28, 2
      %s30 = scalar_select %p29, 0, %s28
      %s31 = ssub.s32 %s18, %s30
      %p32 = scmp.eq.s32.totalorder %s31, 0
      %s34 = sadd.s32 %s33, 1
      %s35 = scalar_select %p32, %s33, %s34
      %p38 = pneg %p32
      %p39 = scmp.eq.s32.totalorder %s11, 1
      %p40 = por %p38, %p39
      %p41 = scmp.ne.s32.totalorder %s33, %s36
      %p42 = scmp.eq.s32.totalorder %s11, 0
      %p43 = por %p41, %p42
      %p44 = scmp.ne.s32.totalorder %s33, %s36
      %p45 = scmp.eq.s32.totalorder %s16, 1
      %p46 = por %p44, %p45
      %p47 = scmp.ne.s32.totalorder %s36, %s37
      %p48 = scmp.eq.s32.totalorder %s16, 0
      %p49 = por %p47, %p48
      %p50 = scmp.ne.s32.totalorder %s36, %s37
      %p51 = scmp.eq.s32.totalorder %s17, 1
      %p52 = por %p50, %p51
      %p54 = scmp.ne.s32.totalorder %s37, %s53
      %p55 = scmp.eq.s32.totalorder %s17, 0
      %p56 = por %p54, %p55
      %s58 = sadd.s32 %s57, 1
      %p61 = scmp.eq.s32.totalorder %s11, 1
      %p62 = scmp.ne.s32.totalorder %s57, %s59
      %p63 = scmp.eq.s32.totalorder %s11, 0
      %p64 = por %p62, %p63
      %p65 = scmp.ne.s32.totalorder %s57, %s59
      %p66 = scmp.eq.s32.totalorder %s16, 1
      %p67 = por %p65, %p66
      %p68 = scmp.ne.s32.totalorder %s59, %s60
      %p69 = scmp.eq.s32.totalorder %s16, 0
      %p70 = por %p68, %p69
      %p71 = scmp.ne.s32.totalorder %s59, %s60
      %p72 = scmp.eq.s32.totalorder %s17, 1
      %p73 = por %p71, %p72
      %p75 = scmp.ne.s32.totalorder %s60, %s74
      %p76 = scmp.eq.s32.totalorder %s17, 0
      %p77 = por %p75, %p76
      %s78 = ssub.s32 %s18, %s30
      %s79 = ssub.s32 %s19, %s26
      %s80 = sor.u32 %s78, %s79
      %p81 = scmp.eq.s32.totalorder %s80, 0
      %s83 = sadd.s32 %s82, 1
      %s84 = scalar_select %p81, %s82, %s83
      %p87 = pneg %p81
      %p88 = scmp.eq.s32.totalorder %s11, 1
      %p89 = por %p87, %p88
      %p90 = scmp.ne.s32.totalorder %s82, %s85
      %p91 = scmp.eq.s32.totalorder %s11, 0
      %p92 = por %p90, %p91
      %p93 = scmp.ne.s32.totalorder %s82, %s85
      %p94 = scmp.eq.s32.totalorder %s16, 1
      %p95 = por %p93, %p94
      %p96 = scmp.ne.s32.totalorder %s85, %s86
      %p97 = scmp.eq.s32.totalorder %s16, 0
      %p98 = por %p96, %p97
      %p99 = scmp.ne.s32.totalorder %s85, %s86
      %p100 = scmp.eq.s32.totalorder %s17, 1
      %p101 = por %p99, %p100
      %p103 = scmp.ne.s32.totalorder %s86, %s102
      %p104 = scmp.eq.s32.totalorder %s17, 0
      %p105 = por %p103, %p104
      %p106 = scmp.le.s32.totalorder 1, %s11
      %p107 = scmp.lt.s32.totalorder %s11, 3
      %p108 = pnand %p106, %p107
      %p109 = pneg %p108
      // Predicated region
      $region9: #{tpu_custom_call.1} parent=5 // pred_check
        _
      $region10: #{tpu_custom_call.1} parent=5 // pred_check_branch
        %111 = sbr.rel (%p108) target = $region12
      $region11: #{tpu_custom_call.1} parent=5 // pred_region
        %s112 = ssub.s32 %s11, 1
        // Predicated region
        $region13: #{tpu_custom_call.1} parent=11 // pred_check
          %p113 = pneg %p70
        $region14: #{tpu_custom_call.1} parent=11 // pred_check_branch
          %115 = sbr.rel (%p113) target = $region16
        $region15: #{tpu_custom_call.1} parent=11 // pred_region
          _
        $region16: #{tpu_custom_call.1} parent=11 // pred_fallthru
          _
      $region12: #{tpu_custom_call.1} parent=5 // pred_fallthru
        _
      %p116 = scmp.lt.s32.totalorder %s11, 2
      // Predicated region
      $region17: #{tpu_custom_call.1} parent=5 // pred_check
        %p117 = pneg %p116
      $region18: #{tpu_custom_call.1} parent=5 // pred_check_branch
        %119 = sbr.rel (%p117) target = $region20
      $region19: #{tpu_custom_call.1} parent=5 // pred_region
        // Predicated region
        $region21: #{tpu_custom_call.1} parent=19 // pred_check
          %p120 = pneg %p43
        $region22: #{tpu_custom_call.1} parent=19 // pred_check_branch
          %122 = sbr.rel (%p120) target = $region24
        $region23: #{tpu_custom_call.1} parent=19 // pred_region
          %p123 = scmp.lt.s32.totalorder %s18, 1
          %s124 = scalar_select %p123, %s18, 1
          %s125 = smul.addr %s124, 54
          %s126 = smul.addr %s125, 4
          %s127 = scalar_lea.vmem %s0, %s126
        $region24: #{tpu_custom_call.1} parent=19 // pred_fallthru
          _
      $region20: #{tpu_custom_call.1} parent=5 // pred_fallthru
        _
      %p128 = scmp.le.s32.totalorder 1, %s11
      %p129 = scmp.lt.s32.totalorder %s11, 3
      %p130 = pnand %p128, %p129
      %p131 = pneg %p130
      // Predicated region
      $region25: #{tpu_custom_call.1} parent=5 // pred_check
        _
      $region26: #{tpu_custom_call.1} parent=5 // pred_check_branch
        %133 = sbr.rel (%p130) target = $region28
      $region27: #{tpu_custom_call.1} parent=5 // pred_region
        %s134 = ssub.s32 %s11, 1
        %p135 = scmp.lt.s32.totalorder %s20, 1
        %s136 = scalar_select %p135, %s20, 1
        %s137 = smul.addr %s136, 54
        %s138 = smul.addr %s137, 4
        %s139 = scalar_lea.vmem %s0, %s138
        %p140 = pneg %p49
        %p141 = pneg %p46
        %p142 = pneg %p70
        %p143 = pneg %p67
        %p144 = pneg %p98
        %p145 = pneg %p95
        %s146 = sand.u32 %s85, 1
        %s147 = scalar_lea.sflag [#allocation3], %s146
        %s148 = sand.u32 %s85, 1
        %s149 = smul.addr %s148, 128
        %s150 = scalar_lea.vmem [#allocation2], %s149
        %p151 = scmp.lt.s32.totalorder %s20, 1
        %s152 = scalar_select %p151, %s20, 1
        %s153 = smul.addr %s152, 54
        %s154 = smul.addr %s153, 4
        %s155 = scalar_lea.vmem %s0, %s154
        %s156 = smul.u32 32, %s21
        %s158 = smul.u32 %s21, 16
        %s159 = smul.u32 %s158, 3
        %s160 = smul.addr %s159, 4
        %s161 = scalar_lea.vmem %s155, %s160
        %v162 = vld [vmem:[%s161] sm:$0xf]
        %v163 = vld [vmem:[%s161 + $0x4] sm:$0xf]
        %v164 = vld [vmem:[%s161 + $0x8] sm:$0x1]
        %v165 = vld [vmem:[%s161 + $0xc] sm:$0xf]
        %v166 = vld [vmem:[%s161 + $0x10] sm:$0xf]
        %v167 = vld [vmem:[%s161 + $0x14] sm:$0x1]
        %v168 = vld [vmem:[%s161 + $0x18] sm:$0xf]
        %v169 = vld [vmem:[%s161 + $0x1c] sm:$0xf]
        %v170 = vld [vmem:[%s161 + $0x20] sm:$0x1]
        %v171 = vld [vmem:[%s161 + $0x24] sm:$0xf]
        %v172 = vld [vmem:[%s161 + $0x28] sm:$0xf]
        %v173 = vld [vmem:[%s161 + $0x2c] sm:$0x1]
        %v174 = vld [vmem:[%s161 + $0x30] sm:$0xf]
        %v175 = vld [vmem:[%s161 + $0x34] sm:$0xf]
        %v176 = vld [vmem:[%s161 + $0x38] sm:$0x1]
        %v177 = vld [vmem:[%s161 + $0x3c] sm:$0xf]
        %v178 = vld [vmem:[%s161 + $0x40] sm:$0xf]
        %v179 = vld [vmem:[%s161 + $0x44] sm:$0x1]
        %v180 = vld [vmem:[%s161 + $0x48] sm:$0xf]
        %v181 = vld [vmem:[%s161 + $0x4c] sm:$0xf]
        %v182 = vld [vmem:[%s161 + $0x50] sm:$0x1]
        %v183 = vld [vmem:[%s161 + $0x54] sm:$0xf]
        %v184 = vld [vmem:[%s161 + $0x58] sm:$0xf]
        %v185 = vld [vmem:[%s161 + $0x5c] sm:$0x1]
        %v186 = vld [vmem:[%s161 + $0x60] sm:$0xf]
        %v187 = vld [vmem:[%s161 + $0x64] sm:$0xf]
        %v188 = vld [vmem:[%s161 + $0x68] sm:$0x1]
        %v189 = vld [vmem:[%s161 + $0x6c] sm:$0xf]
        %v190 = vld [vmem:[%s161 + $0x70] sm:$0xf]
        %v191 = vld [vmem:[%s161 + $0x74] sm:$0x1]
        %v192 = vld [vmem:[%s161 + $0x78] sm:$0xf]
        %v193 = vld [vmem:[%s161 + $0x7c] sm:$0xf]
        %v194 = vld [vmem:[%s161 + $0x80] sm:$0x1]
        %v195 = vld [vmem:[%s161 + $0x84] sm:$0xf]
        %v196 = vld [vmem:[%s161 + $0x88] sm:$0xf]
        %v197 = vld [vmem:[%s161 + $0x8c] sm:$0x1]
        %v198 = vld [vmem:[%s161 + $0x90] sm:$0xf]
        %v199 = vld [vmem:[%s161 + $0x94] sm:$0xf]
        %v200 = vld [vmem:[%s161 + $0x98] sm:$0x1]
        %v201 = vld [vmem:[%s161 + $0x9c] sm:$0xf]
        %v202 = vld [vmem:[%s161 + $0xa0] sm:$0xf]
        %v203 = vld [vmem:[%s161 + $0xa4] sm:$0x1]
        %v204 = vld [vmem:[%s161 + $0xa8] sm:$0xf]
        %v205 = vld [vmem:[%s161 + $0xac] sm:$0xf]
        %v206 = vld [vmem:[%s161 + $0xb0] sm:$0x1]
        %v207 = vld [vmem:[%s161 + $0xb4] sm:$0xf]
        %v208 = vld [vmem:[%s161 + $0xb8] sm:$0xf]
        %v209 = vld [vmem:[%s161 + $0xbc] sm:$0x1]
        %v210 = vld [vmem:[%s161 + $0xc0] sm:$0xf]
        %v211 = vld [vmem:[%s161 + $0xc4] sm:$0xf]
        %v212 = vld [vmem:[%s161 + $0xc8] sm:$0x1]
        %v213 = vld [vmem:[%s161 + $0xcc] sm:$0xf]
        %v214 = vld [vmem:[%s161 + $0xd0] sm:$0xf]
        %v215 = vld [vmem:[%s161 + $0xd4] sm:$0x1]
        %vm216 = vsmask.f32 3328
        %vm217 = vsmask.f32 7440
        %vm218 = vmor %vm216, %vm217
        %v220 = vshrl.u32 %v162, 16
        %v222 = vrot.slane %v220, 4
        %v223 = vshll.u32 %v162, 16
        %v225 = vrot.slane %v223, 5
        %v226 = vor.u32 %v222, %v225
        %v227 = vrot.slane %v226, 4
        %v229 = vshll.u32 %v163, 16
        %v231 = vrot.slane %v229, 5
        %v232 = vsel %vm218, %v227, %v231
        %v233 = vshrl.u32 %v163, 16
        %v235 = vrot.slane %v233, 4
        %v236 = vor.u32 %v235, %v231
        %v237 = vrot.slane %v236, 4
        %v239 = vshll.u32 %v164, 16
        %v241 = vrot.slane %v239, 5
        %v242 = vsel %vm218, %v237, %v241
        %v244 = vshrl.u32 %v165, 16
        %v246 = vrot.slane %v244, 4
        %v247 = vshll.u32 %v165, 16
        %v249 = vrot.slane %v247, 5
        %v250 = vor.u32 %v246, %v249
        %v251 = vrot.slane %v250, 4
        %v253 = vshll.u32 %v166, 16
        %v255 = vrot.slane %v253, 5
        %v256 = vsel %vm218, %v251, %v255
        %v257 = vshrl.u32 %v166, 16
        %v259 = vrot.slane %v257, 4
        %v260 = vor.u32 %v259, %v255
        %v261 = vrot.slane %v260, 4
        %v263 = vshll.u32 %v167, 16
        %v265 = vrot.slane %v263, 5
        %v266 = vsel %vm218, %v261, %v265
        %v268 = vshrl.u32 %v168, 16
        %v270 = vrot.slane %v268, 4
        %v271 = vshll.u32 %v168, 16
        %v273 = vrot.slane %v271, 5
        %v274 = vor.u32 %v270, %v273
        %v275 = vrot.slane %v274, 4
        %v277 = vshll.u32 %v169, 16
        %v279 = vrot.slane %v277, 5
        %v280 = vsel %vm218, %v275, %v279
        %v281 = vshrl.u32 %v169, 16
        %v283 = vrot.slane %v281, 4
        %v284 = vor.u32 %v283, %v279
        %v285 = vrot.slane %v284, 4
        %v287 = vshll.u32 %v170, 16
        %v289 = vrot.slane %v287, 5
        %v290 = vsel %vm218, %v285, %v289
        %v292 = vshrl.u32 %v171, 16
        %v294 = vrot.slane %v292, 4
        %v295 = vshll.u32 %v171, 16
        %v297 = vrot.slane %v295, 5
        %v298 = vor.u32 %v294, %v297
        %v299 = vrot.slane %v298, 4
        %v301 = vshll.u32 %v172, 16
        %v303 = vrot.slane %v301, 5
        %v304 = vsel %vm218, %v299, %v303
        %v305 = vshrl.u32 %v172, 16
        %v307 = vrot.slane %v305, 4
        %v308 = vor.u32 %v307, %v303
        %v309 = vrot.slane %v308, 4
        %v311 = vshll.u32 %v173, 16
        %v313 = vrot.slane %v311, 5
        %v314 = vsel %vm218, %v309, %v313
        %v316 = vshrl.u32 %v174, 16
        %v318 = vrot.slane %v316, 4
        %v319 = vshll.u32 %v174, 16
        %v321 = vrot.slane %v319, 5
        %v322 = vor.u32 %v318, %v321
        %v323 = vrot.slane %v322, 4
        %v325 = vshll.u32 %v175, 16
        %v327 = vrot.slane %v325, 5
        %v328 = vsel %vm218, %v323, %v327
        %v329 = vshrl.u32 %v175, 16
        %v331 = vrot.slane %v329, 4
        %v332 = vor.u32 %v331, %v327
        %v333 = vrot.slane %v332, 4
        %v335 = vshll.u32 %v176, 16
        %v337 = vrot.slane %v335, 5
        %v338 = vsel %vm218, %v333, %v337
        %v340 = vshrl.u32 %v177, 16
        %v342 = vrot.slane %v340, 4
        %v343 = vshll.u32 %v177, 16
        %v345 = vrot.slane %v343, 5
        %v346 = vor.u32 %v342, %v345
        %v347 = vrot.slane %v346, 4
        %v349 = vshll.u32 %v178, 16
        %v351 = vrot.slane %v349, 5
        %v352 = vsel %vm218, %v347, %v351
        %v353 = vshrl.u32 %v178, 16
        %v355 = vrot.slane %v353, 4
        %v356 = vor.u32 %v355, %v351
        %v357 = vrot.slane %v356, 4
        %v359 = vshll.u32 %v179, 16
        %v361 = vrot.slane %v359, 5
        %v362 = vsel %vm218, %v357, %v361
        %v364 = vshrl.u32 %v180, 16
        %v366 = vrot.slane %v364, 4
        %v367 = vshll.u32 %v180, 16
        %v369 = vrot.slane %v367, 5
        %v370 = vor.u32 %v366, %v369
        %v371 = vrot.slane %v370, 4
        %v373 = vshll.u32 %v181, 16
        %v375 = vrot.slane %v373, 5
        %v376 = vsel %vm218, %v371, %v375
        %v377 = vshrl.u32 %v181, 16
        %v379 = vrot.slane %v377, 4
        %v380 = vor.u32 %v379, %v375
        %v381 = vrot.slane %v380, 4
        %v383 = vshll.u32 %v182, 16
        %v385 = vrot.slane %v383, 5
        %v386 = vsel %vm218, %v381, %v385
        %v388 = vshrl.u32 %v183, 16
        %v390 = vrot.slane %v388, 4
        %v391 = vshll.u32 %v183, 16
        %v393 = vrot.slane %v391, 5
        %v394 = vor.u32 %v390, %v393
        %v395 = vrot.slane %v394, 4
        %v397 = vshll.u32 %v184, 16
        %v399 = vrot.slane %v397, 5
        %v400 = vsel %vm218, %v395, %v399
        %v401 = vshrl.u32 %v184, 16
        %v403 = vrot.slane %v401, 4
        %v404 = vor.u32 %v403, %v399
        %v405 = vrot.slane %v404, 4
        %v407 = vshll.u32 %v185, 16
        %v409 = vrot.slane %v407, 5
        %v410 = vsel %vm218, %v405, %v409
        %v412 = vshrl.u32 %v186, 16
        %v414 = vrot.slane %v412, 4
        %v415 = vshll.u32 %v186, 16
        %v417 = vrot.slane %v415, 5
        %v418 = vor.u32 %v414, %v417
        %v419 = vrot.slane %v418, 4
        %v421 = vshll.u32 %v187, 16
        %v423 = vrot.slane %v421, 5
        %v424 = vsel %vm218, %v419, %v423
        %v425 = vshrl.u32 %v187, 16
        %v427 = vrot.slane %v425, 4
        %v428 = vor.u32 %v427, %v423
        %v429 = vrot.slane %v428, 4
        %v431 = vshll.u32 %v188, 16
        %v433 = vrot.slane %v431, 5
        %v434 = vsel %vm218, %v429, %v433
        %v436 = vshrl.u32 %v189, 16
        %v438 = vrot.slane %v436, 4
        %v439 = vshll.u32 %v189, 16
        %v441 = vrot.slane %v439, 5
        %v442 = vor.u32 %v438, %v441
        %v443 = vrot.slane %v442, 4
        %v445 = vshll.u32 %v190, 16
        %v447 = vrot.slane %v445, 5
        %v448 = vsel %vm218, %v443, %v447
        %v449 = vshrl.u32 %v190, 16
        %v451 = vrot.slane %v449, 4
        %v452 = vor.u32 %v451, %v447
        %v453 = vrot.slane %v452, 4
        %v455 = vshll.u32 %v191, 16
        %v457 = vrot.slane %v455, 5
        %v458 = vsel %vm218, %v453, %v457
        %v460 = vshrl.u32 %v192, 16
        %v462 = vrot.slane %v460, 4
        %v463 = vshll.u32 %v192, 16
        %v465 = vrot.slane %v463, 5
        %v466 = vor.u32 %v462, %v465
        %v467 = vrot.slane %v466, 4
        %v469 = vshll.u32 %v193, 16
        %v471 = vrot.slane %v469, 5
        %v472 = vsel %vm218, %v467, %v471
        %v473 = vshrl.u32 %v193, 16
        %v475 = vrot.slane %v473, 4
        %v476 = vor.u32 %v475, %v471
        %v477 = vrot.slane %v476, 4
        %v479 = vshll.u32 %v194, 16
        %v481 = vrot.slane %v479, 5
        %v482 = vsel %vm218, %v477, %v481
        %v484 = vshrl.u32 %v195, 16
        %v486 = vrot.slane %v484, 4
        %v487 = vshll.u32 %v195, 16
        %v489 = vrot.slane %v487, 5
        %v490 = vor.u32 %v486, %v489
        %v491 = vrot.slane %v490, 4
        %v493 = vshll.u32 %v196, 16
        %v495 = vrot.slane %v493, 5
        %v496 = vsel %vm218, %v491, %v495
        %v497 = vshrl.u32 %v196, 16
        %v499 = vrot.slane %v497, 4
        %v500 = vor.u32 %v499, %v495
        %v501 = vrot.slane %v500, 4
        %v503 = vshll.u32 %v197, 16
        %v505 = vrot.slane %v503, 5
        %v506 = vsel %vm218, %v501, %v505
        %v508 = vshrl.u32 %v198, 16
        %v510 = vrot.slane %v508, 4
        %v511 = vshll.u32 %v198, 16
        %v513 = vrot.slane %v511, 5
        %v514 = vor.u32 %v510, %v513
        %v515 = vrot.slane %v514, 4
        %v517 = vshll.u32 %v199, 16
        %v519 = vrot.slane %v517, 5
        %v520 = vsel %vm218, %v515, %v519
        %v521 = vshrl.u32 %v199, 16
        %v523 = vrot.slane %v521, 4
        %v524 = vor.u32 %v523, %v519
        %v525 = vrot.slane %v524, 4
        %v527 = vshll.u32 %v200, 16
        %v529 = vrot.slane %v527, 5
        %v530 = vsel %vm218, %v525, %v529
        %v532 = vshrl.u32 %v201, 16
        %v534 = vrot.slane %v532, 4
        %v535 = vshll.u32 %v201, 16
        %v537 = vrot.slane %v535, 5
        %v538 = vor.u32 %v534, %v537
        %v539 = vrot.slane %v538, 4
        %v541 = vshll.u32 %v202, 16
        %v543 = vrot.slane %v541, 5
        %v544 = vsel %vm218, %v539, %v543
        %v545 = vshrl.u32 %v202, 16
        %v547 = vrot.slane %v545, 4
        %v548 = vor.u32 %v547, %v543
        %v549 = vrot.slane %v548, 4
        %v551 = vshll.u32 %v203, 16
        %v553 = vrot.slane %v551, 5
        %v554 = vsel %vm218, %v549, %v553
        %v556 = vshrl.u32 %v204, 16
        %v558 = vrot.slane %v556, 4
        %v559 = vshll.u32 %v204, 16
        %v561 = vrot.slane %v559, 5
        %v562 = vor.u32 %v558, %v561
        %v563 = vrot.slane %v562, 4
        %v565 = vshll.u32 %v205, 16
        %v567 = vrot.slane %v565, 5
        %v568 = vsel %vm218, %v563, %v567
        %v569 = vshrl.u32 %v205, 16
        %v571 = vrot.slane %v569, 4
        %v572 = vor.u32 %v571, %v567
        %v573 = vrot.slane %v572, 4
        %v575 = vshll.u32 %v206, 16
        %v577 = vrot.slane %v575, 5
        %v578 = vsel %vm218, %v573, %v577
        %v580 = vshrl.u32 %v207, 16
        %v582 = vrot.slane %v580, 4
        %v583 = vshll.u32 %v207, 16
        %v585 = vrot.slane %v583, 5
        %v586 = vor.u32 %v582, %v585
        %v587 = vrot.slane %v586, 4
        %v589 = vshll.u32 %v208, 16
        %v591 = vrot.slane %v589, 5
        %v592 = vsel %vm218, %v587, %v591
        %v593 = vshrl.u32 %v208, 16
        %v595 = vrot.slane %v593, 4
        %v596 = vor.u32 %v595, %v591
        %v597 = vrot.slane %v596, 4
        %v599 = vshll.u32 %v209, 16
        %v601 = vrot.slane %v599, 5
        %v602 = vsel %vm218, %v597, %v601
        %vm651 = vcmask 1042432
        %vm652 = vcmask 1046532
        %vm653 = vmor %vm651, %vm652
        %v654 = vrot.slane %v162, 5
        %v655 = vrot.slane %v654, 4
        %v656 = vrot.slane %v163, 5
        %v657 = vsel %vm653, %v655, %v656
        %v658 = vrot.slane %v656, 4
        %v659 = vrot.slane %v164, 5
        %v660 = vsel %vm653, %v658, %v659
        %v661 = vrot.slane %v165, 5
        %v662 = vrot.slane %v661, 4
        %v663 = vrot.slane %v166, 5
        %v664 = vsel %vm653, %v662, %v663
        %v665 = vrot.slane %v663, 4
        %v666 = vrot.slane %v167, 5
        %v667 = vsel %vm653, %v665, %v666
        %v668 = vrot.slane %v168, 5
        %v669 = vrot.slane %v668, 4
        %v670 = vrot.slane %v169, 5
        %v671 = vsel %vm653, %v669, %v670
        %v672 = vrot.slane %v670, 4
        %v673 = vrot.slane %v170, 5
        %v674 = vsel %vm653, %v672, %v673
        %v675 = vrot.slane %v171, 5
        %v676 = vrot.slane %v675, 4
        %v677 = vrot.slane %v172, 5
        %v678 = vsel %vm653, %v676, %v677
        %v679 = vrot.slane %v677, 4
        %v680 = vrot.slane %v173, 5
        %v681 = vsel %vm653, %v679, %v680
        %v682 = vrot.slane %v174, 5
        %v683 = vrot.slane %v682, 4
        %v684 = vrot.slane %v175, 5
        %v685 = vsel %vm653, %v683, %v684
        %v686 = vrot.slane %v684, 4
        %v687 = vrot.slane %v176, 5
        %v688 = vsel %vm653, %v686, %v687
        %v689 = vrot.slane %v177, 5
        %v690 = vrot.slane %v689, 4
        %v691 = vrot.slane %v178, 5
        %v692 = vsel %vm653, %v690, %v691
        %v693 = vrot.slane %v691, 4
        %v694 = vrot.slane %v179, 5
        %v695 = vsel %vm653, %v693, %v694
        %v696 = vrot.slane %v180, 5
        %v697 = vrot.slane %v696, 4
        %v698 = vrot.slane %v181, 5
        %v699 = vsel %vm653, %v697, %v698
        %v700 = vrot.slane %v698, 4
        %v701 = vrot.slane %v182, 5
        %v702 = vsel %vm653, %v700, %v701
        %v703 = vrot.slane %v183, 5
        %v704 = vrot.slane %v703, 4
        %v705 = vrot.slane %v184, 5
        %v706 = vsel %vm653, %v704, %v705
        %v707 = vrot.slane %v705, 4
        %v708 = vrot.slane %v185, 5
        %v709 = vsel %vm653, %v707, %v708
        %v710 = vrot.slane %v186, 5
        %v711 = vrot.slane %v710, 4
        %v712 = vrot.slane %v187, 5
        %v713 = vsel %vm653, %v711, %v712
        %v714 = vrot.slane %v712, 4
        %v715 = vrot.slane %v188, 5
        %v716 = vsel %vm653, %v714, %v715
        %v717 = vrot.slane %v189, 5
        %v718 = vrot.slane %v717, 4
        %v719 = vrot.slane %v190, 5
        %v720 = vsel %vm653, %v718, %v719
        %v721 = vrot.slane %v719, 4
        %v722 = vrot.slane %v191, 5
        %v723 = vsel %vm653, %v721, %v722
        %v724 = vrot.slane %v192, 5
        %v725 = vrot.slane %v724, 4
        %v726 = vrot.slane %v193, 5
        %v727 = vsel %vm653, %v725, %v726
        %v728 = vrot.slane %v726, 4
        %v729 = vrot.slane %v194, 5
        %v730 = vsel %vm653, %v728, %v729
        %v731 = vrot.slane %v195, 5
        %v732 = vrot.slane %v731, 4
        %v733 = vrot.slane %v196, 5
        %v734 = vsel %vm653, %v732, %v733
        %v735 = vrot.slane %v733, 4
        %v736 = vrot.slane %v197, 5
        %v737 = vsel %vm653, %v735, %v736
        %v738 = vrot.slane %v198, 5
        %v739 = vrot.slane %v738, 4
        %v740 = vrot.slane %v199, 5
        %v741 = vsel %vm653, %v739, %v740
        %v742 = vrot.slane %v740, 4
        %v743 = vrot.slane %v200, 5
        %v744 = vsel %vm653, %v742, %v743
        %v745 = vrot.slane %v201, 5
        %v746 = vrot.slane %v745, 4
        %v747 = vrot.slane %v202, 5
        %v748 = vsel %vm653, %v746, %v747
        %v749 = vrot.slane %v747, 4
        %v750 = vrot.slane %v203, 5
        %v751 = vsel %vm653, %v749, %v750
        %v752 = vrot.slane %v204, 5
        %v753 = vrot.slane %v752, 4
        %v754 = vrot.slane %v205, 5
        %v755 = vsel %vm653, %v753, %v754
        %v756 = vrot.slane %v754, 4
        %v757 = vrot.slane %v206, 5
        %v758 = vsel %vm653, %v756, %v757
        %v759 = vrot.slane %v207, 5
        %v760 = vrot.slane %v759, 4
        %v761 = vrot.slane %v208, 5
        %v762 = vsel %vm653, %v760, %v761
        %v763 = vrot.slane %v761, 4
        %v764 = vrot.slane %v209, 5
        %v765 = vsel %vm653, %v763, %v764
        %v767 = vshrl.u32 %v210, 16
        %v769 = vrot.slane %v767, 4
        %v770 = vshll.u32 %v210, 16
        %v772 = vrot.slane %v770, 5
        %v773 = vor.u32 %v769, %v772
        %v774 = vrot.slane %v773, 4
        %v776 = vshll.u32 %v211, 16
        %v778 = vrot.slane %v776, 5
        %v779 = vsel %vm218, %v774, %v778
        %v780 = vshrl.u32 %v211, 16
        %v782 = vrot.slane %v780, 4
        %v783 = vor.u32 %v782, %v778
        %v784 = vrot.slane %v783, 4
        %v786 = vshll.u32 %v212, 16
        %v788 = vrot.slane %v786, 5
        %v789 = vsel %vm218, %v784, %v788
        %v793 = vrot.slane %v210, 5
        %v794 = vrot.slane %v793, 4
        %v795 = vrot.slane %v211, 5
        %v796 = vsel %vm653, %v794, %v795
        %v797 = vrot.slane %v795, 4
        %v798 = vrot.slane %v212, 5
        %v799 = vsel %vm653, %v797, %v798
        %v801 = vshrl.u32 %v213, 16
        %v803 = vrot.slane %v801, 4
        %v804 = vshll.u32 %v213, 16
        %v806 = vrot.slane %v804, 5
        %v807 = vor.u32 %v803, %v806
        %v808 = vrot.slane %v807, 4
        %v810 = vshll.u32 %v214, 16
        %v812 = vrot.slane %v810, 5
        %v813 = vsel %vm218, %v808, %v812
        %v814 = vshrl.u32 %v214, 16
        %v816 = vrot.slane %v814, 4
        %v817 = vor.u32 %v816, %v812
        %v818 = vrot.slane %v817, 4
        %v820 = vshll.u32 %v215, 16
        %v822 = vrot.slane %v820, 5
        %v823 = vsel %vm218, %v818, %v822
        %v827 = vrot.slane %v213, 5
        %v828 = vrot.slane %v827, 4
        %v829 = vrot.slane %v214, 5
        %v830 = vsel %vm653, %v828, %v829
        %v831 = vrot.slane %v829, 4
        %v832 = vrot.slane %v215, 5
        %v833 = vsel %vm653, %v831, %v832
        %v834 = vld [vmem:[%s1] sm:$0x3]
        %s835 = scalar_lea.vmem %s1, 2
        %v836 = vld [vmem:[%s835] sm:$0x3]
        %v837 = vunpack.c.l.b16 %v232
        %v838 = vunpack.c.l.b16 %v242
        %v839 = vunpack.c.l.b16 %v256
        %v840 = vunpack.c.l.b16 %v266
        %v841 = vunpack.c.l.b16 %v280
        %v842 = vunpack.c.l.b16 %v290
        %v843 = vunpack.c.l.b16 %v304
        %v844 = vunpack.c.l.b16 %v314
        %v845 = vunpack.c.l.b16 %v328
        %v846 = vunpack.c.l.b16 %v338
        %v847 = vunpack.c.l.b16 %v352
        %v848 = vunpack.c.l.b16 %v362
        %v849 = vunpack.c.l.b16 %v376
        %v850 = vunpack.c.l.b16 %v386
        %v851 = vunpack.c.l.b16 %v400
        %v852 = vunpack.c.l.b16 %v410
        %v853 = vunpack.c.l.b16 %v424
        %v854 = vunpack.c.l.b16 %v434
        %v855 = vunpack.c.l.b16 %v448
        %v856 = vunpack.c.l.b16 %v458
        %v857 = vunpack.c.l.b16 %v472
        %v858 = vunpack.c.l.b16 %v482
        %v859 = vunpack.c.l.b16 %v496
        %v860 = vunpack.c.l.b16 %v506
        %v861 = vunpack.c.l.b16 %v520
        %v862 = vunpack.c.l.b16 %v530
        %v863 = vunpack.c.l.b16 %v544
        %v864 = vunpack.c.l.b16 %v554
        %v865 = vunpack.c.l.b16 %v568
        %v866 = vunpack.c.l.b16 %v578
        %v867 = vunpack.c.l.b16 %v592
        %v868 = vunpack.c.l.b16 %v602
        %v869 = vpack.c.b16 %v838, %v837
        %v870 = vpack.c.b16 %v840, %v839
        %v871 = vpack.c.b16 %v842, %v841
        %v872 = vpack.c.b16 %v844, %v843
        %v873 = vpack.c.b16 %v846, %v845
        %v874 = vpack.c.b16 %v848, %v847
        %v875 = vpack.c.b16 %v850, %v849
        %v876 = vpack.c.b16 %v852, %v851
        %v877 = vpack.c.b16 %v854, %v853
        %v878 = vpack.c.b16 %v856, %v855
        %v879 = vpack.c.b16 %v858, %v857
        %v880 = vpack.c.b16 %v860, %v859
        %v881 = vpack.c.b16 %v862, %v861
        %v882 = vpack.c.b16 %v864, %v863
        %v883 = vpack.c.b16 %v866, %v865
        %v884 = vpack.c.b16 %v868, %v867
        %vm885 = vcmask 31744
        %v887 = vsel %vm885, %v869, 0
        %v890 = vsel %vm885, %v870, 0
        %v893 = vsel %vm885, %v871, 0
        %v896 = vsel %vm885, %v872, 0
        %v899 = vsel %vm885, %v873, 0
        %v902 = vsel %vm885, %v874, 0
        %v905 = vsel %vm885, %v875, 0
        %v908 = vsel %vm885, %v876, 0
        %v911 = vsel %vm885, %v877, 0
        %v914 = vsel %vm885, %v878, 0
        %v917 = vsel %vm885, %v879, 0
        %v920 = vsel %vm885, %v880, 0
        %v923 = vsel %vm885, %v881, 0
        %v926 = vsel %vm885, %v882, 0
        %v929 = vsel %vm885, %v883, 0
        %v932 = vsel %vm885, %v884, 0
        %vm934 = vcmask 1041408
        %v936 = vsel %vm934, %v836, 0
        %938 = vmatprep.subr.bf16.mxu0 0
        %939 = vmatpush1.bf16.msra.mxu0 %v936
        %940 = vmatprep.subr.bf16.mxu0 0
        %941 = vmatpush1.bf16.msra.mxu0 0
        %942 = vmatprep.subr.bf16.mxu0 0
        %943 = vmatpush1.bf16.msra.mxu0 0
        %944 = vmatprep.subr.bf16.mxu0 0
        %945 = vmatpush1.bf16.msra.mxu0 0
        %946 = vmatprep.subr.bf16.mxu0 0
        %947 = vmatpush1.bf16.msra.mxu0 0
        %948 = vmatprep.subr.bf16.mxu0 0
        %949 = vmatpush1.bf16.msra.mxu0 0
        %950 = vmatprep.subr.bf16.mxu0 0
        %951 = vmatpush1.bf16.msra.mxu0 0
        %952 = vmatprep.subr.bf16.mxu0 0
        %953 = vmatpush1.bf16.msra.mxu0 0
        %954 = vmatprep.subr.bf16.mxu0 0
        %955 = vmatpush1.bf16.msra.mxu0 0
        %956 = vmatprep.subr.bf16.mxu0 0
        %957 = vmatpush1.bf16.msra.mxu0 0
        %958 = vmatprep.subr.bf16.mxu0 0
        %959 = vmatpush1.bf16.msra.mxu0 0
        %960 = vmatprep.subr.bf16.mxu0 0
        %961 = vmatpush1.bf16.msra.mxu0 0
        %962 = vmatprep.subr.bf16.mxu0 0
        %963 = vmatpush1.bf16.msra.mxu0 0
        %964 = vmatprep.subr.bf16.mxu0 0
        %965 = vmatpush1.bf16.msra.mxu0 0
        %966 = vmatprep.subr.bf16.mxu0 0
        %967 = vmatpush1.bf16.msra.mxu0 0
        %968 = vmatprep.subr.bf16.mxu0 0
        %969 = vmatpush1.bf16.msra.mxu0 0
        %970 = vmatprep.mubr.bf16.mxu0 0
        %971 = vmatmul.mubr.bf16.gmra.mrb[0].mxu0 %v887
        %v972 = vpop.f32.mrb[0].mxu0
        %v973 = vadd.f32 0.0, %v972
        %v974 = vpop.f32.mrb[0].mxu0
        %v975 = vpop.f32.mrb[0].mxu0
        %v976 = vadd.f32 0.0, %v975
        %v977 = vpop.f32.mrb[0].mxu0
        %978 = vmatprep.mubr.bf16.mxu0 0
        %979 = vmatmul.mubr.bf16.gmra.mrb[0].mxu0 %v890
        %v980 = vpop.f32.mrb[0].mxu0
        %v981 = vadd.f32 0.0, %v980
        %v982 = vpop.f32.mrb[0].mxu0
        %v983 = vpop.f32.mrb[0].mxu0
        %v984 = vadd.f32 0.0, %v983
        %v985 = vpop.f32.mrb[0].mxu0
        %986 = vmatprep.mubr.bf16.mxu0 0
        %987 = vmatmul.mubr.bf16.gmra.mrb[0].mxu0 %v893
        %v988 = vpop.f32.mrb[0].mxu0
        %v989 = vadd.f32 0.0, %v988
        %v990 = vpop.f32.mrb[0].mxu0
        %v991 = vpop.f32.mrb[0].mxu0
        %v992 = vadd.f32 0.0, %v991
        %v993 = vpop.f32.mrb[0].mxu0
        %994 = vmatprep.mubr.bf16.mxu0 0
        %995 = vmatmul.mubr.bf16.gmra.mrb[0].mxu0 %v896
        %v996 = vpop.f32.mrb[0].mxu0
        %v997 = vadd.f32 0.0, %v996
        %v998 = vpop.f32.mrb[0].mxu0
        %v999 = vpop.f32.mrb[0].mxu0
        %v1000 = vadd.f32 0.0, %v999
        %v1001 = vpop.f32.mrb[0].mxu0
        %1002 = vmatprep.mubr.bf16.mxu0 0
        %1003 = vmatmul.mubr.bf16.gmra.mrb[0].mxu0 %v899
        %v1004 = vpop.f32.mrb[0].mxu0
        %v1005 = vadd.f32 0.0, %v1004
        %v1006 = vpop.f32.mrb[0].mxu0
        %v1007 = vpop.f32.mrb[0].mxu0
        %v1008 = vadd.f32 0.0, %v1007
        %v1009 = vpop.f32.mrb[0].mxu0
        %1010 = vmatprep.mubr.bf16.mxu0 0
        %1011 = vmatmul.mubr.bf16.gmra.mrb[0].mxu0 %v902
        %v1012 = vpop.f32.mrb[0].mxu0
        %v1013 = vadd.f32 0.0, %v1012
        %v1014 = vpop.f32.mrb[0].mxu0
        %v1015 = vpop.f32.mrb[0].mxu0
        %v1016 = vadd.f32 0.0, %v1015
        %v1017 = vpop.f32.mrb[0].mxu0
        %1018 = vmatprep.mubr.bf16.mxu0 0
        %1019 = vmatmul.mubr.bf16.gmra.mrb[0].mxu0 %v905
        %v1020 = vpop.f32.mrb[0].mxu0
        %v1021 = vadd.f32 0.0, %v1020
        %v1022 = vpop.f32.mrb[0].mxu0
        %v1023 = vpop.f32.mrb[0].mxu0
        %v1024 = vadd.f32 0.0, %v1023
        %v1025 = vpop.f32.mrb[0].mxu0
        %1026 = vmatprep.mubr.bf16.mxu0 0
        %1027 = vmatmul.mubr.bf16.gmra.mrb[0].mxu0 %v908
        %v1028 = vpop.f32.mrb[0].mxu0
        %v1029 = vadd.f32 0.0, %v1028
        %v1030 = vpop.f32.mrb[0].mxu0
        %v1031 = vpop.f32.mrb[0].mxu0
        %v1032 = vadd.f32 0.0, %v1031
        %v1033 = vpop.f32.mrb[0].mxu0
        %1034 = vmatprep.mubr.bf16.mxu0 0
        %1035 = vmatmul.mubr.bf16.gmra.mrb[0].mxu0 %v911
        %v1036 = vpop.f32.mrb[0].mxu0
        %v1037 = vadd.f32 0.0, %v1036
        %v1038 = vpop.f32.mrb[0].mxu0
        %v1039 = vpop.f32.mrb[0].mxu0
        %v1040 = vadd.f32 0.0, %v1039
        %v1041 = vpop.f32.mrb[0].mxu0
        %1042 = vmatprep.mubr.bf16.mxu0 0
        %1043 = vmatmul.mubr.bf16.gmra.mrb[0].mxu0 %v914
        %v1044 = vpop.f32.mrb[0].mxu0
        %v1045 = vadd.f32 0.0, %v1044
        %v1046 = vpop.f32.mrb[0].mxu0
        %v1047 = vpop.f32.mrb[0].mxu0
        %v1048 = vadd.f32 0.0, %v1047
        %v1049 = vpop.f32.mrb[0].mxu0
        %1050 = vmatprep.mubr.bf16.mxu0 0
        %1051 = vmatmul.mubr.bf16.gmra.mrb[0].mxu0 %v917
        %v1052 = vpop.f32.mrb[0].mxu0
        %v1053 = vadd.f32 0.0, %v1052
        %v1054 = vpop.f32.mrb[0].mxu0
        %v1055 = vpop.f32.mrb[0].mxu0
        %v1056 = vadd.f32 0.0, %v1055
        %v1057 = vpop.f32.mrb[0].mxu0
        %1058 = vmatprep.mubr.bf16.mxu0 0
        %1059 = vmatmul.mubr.bf16.gmra.mrb[0].mxu0 %v920
        %v1060 = vpop.f32.mrb[0].mxu0
        %v1061 = vadd.f32 0.0, %v1060
        %v1062 = vpop.f32.mrb[0].mxu0
        %v1063 = vpop.f32.mrb[0].mxu0
        %v1064 = vadd.f32 0.0, %v1063
        %v1065 = vpop.f32.mrb[0].mxu0
        %1066 = vmatprep.mubr.bf16.mxu0 0
        %1067 = vmatmul.mubr.bf16.gmra.mrb[0].mxu0 %v923
        %v1068 = vpop.f32.mrb[0].mxu0
        %v1069 = vadd.f32 0.0, %v1068
        %v1070 = vpop.f32.mrb[0].mxu0
        %v1071 = vpop.f32.mrb[0].mxu0
        %v1072 = vadd.f32 0.0, %v1071
        %v1073 = vpop.f32.mrb[0].mxu0
        %1074 = vmatprep.mubr.bf16.mxu0 0
        %1075 = vmatmul.mubr.bf16.gmra.mrb[0].mxu0 %v926
        %v1076 = vpop.f32.mrb[0].mxu0
        %v1077 = vadd.f32 0.0, %v1076
        %v1078 = vpop.f32.mrb[0].mxu0
        %v1079 = vpop.f32.mrb[0].mxu0
        %v1080 = vadd.f32 0.0, %v1079
        %v1081 = vpop.f32.mrb[0].mxu0
        %1082 = vmatprep.mubr.bf16.mxu0 0
        %1083 = vmatmul.mubr.bf16.gmra.mrb[0].mxu0 %v929
        %v1084 = vpop.f32.mrb[0].mxu0
        %v1085 = vadd.f32 0.0, %v1084
        %v1086 = vpop.f32.mrb[0].mxu0
        %v1087 = vpop.f32.mrb[0].mxu0
        %v1088 = vadd.f32 0.0, %v1087
        %v1089 = vpop.f32.mrb[0].mxu0
        %1090 = vmatprep.mubr.bf16.mxu0 0
        %1091 = vmatmul.mubr.bf16.gmra.mrb[0].mxu0 %v932
        %v1092 = vpop.f32.mrb[0].mxu0
        %v1093 = vadd.f32 0.0, %v1092
        %v1094 = vpop.f32.mrb[0].mxu0
        %v1095 = vpop.f32.mrb[0].mxu0
        %v1096 = vadd.f32 0.0, %v1095
        %v1097 = vpop.f32.mrb[0].mxu0
        %1098 = vdwg.mxu0
        %v1099 = vunpack.c.l.b16 %v162
        %v1100 = vunpack.c.l.b16 %v163
        %v1101 = vunpack.c.l.b16 %v165
        %v1102 = vunpack.c.l.b16 %v166
        %v1103 = vunpack.c.l.b16 %v168
        %v1104 = vunpack.c.l.b16 %v169
        %v1105 = vunpack.c.l.b16 %v171
        %v1106 = vunpack.c.l.b16 %v172
        %v1107 = vunpack.c.l.b16 %v174
        %v1108 = vunpack.c.l.b16 %v175
        %v1109 = vunpack.c.l.b16 %v177
        %v1110 = vunpack.c.l.b16 %v178
        %v1111 = vunpack.c.l.b16 %v180
        %v1112 = vunpack.c.l.b16 %v181
        %v1113 = vunpack.c.l.b16 %v183
        %v1114 = vunpack.c.l.b16 %v184
        %v1115 = vunpack.c.l.b16 %v186
        %v1116 = vunpack.c.l.b16 %v187
        %v1117 = vunpack.c.l.b16 %v189
        %v1118 = vunpack.c.l.b16 %v190
        %v1119 = vunpack.c.l.b16 %v192
        %v1120 = vunpack.c.l.b16 %v193
        %v1121 = vunpack.c.l.b16 %v195
        %v1122 = vunpack.c.l.b16 %v196
        %v1123 = vunpack.c.l.b16 %v198
        %v1124 = vunpack.c.l.b16 %v199
        %v1125 = vunpack.c.l.b16 %v201
        %v1126 = vunpack.c.l.b16 %v202
        %v1127 = vunpack.c.l.b16 %v204
        %v1128 = vunpack.c.l.b16 %v205
        %v1129 = vunpack.c.l.b16 %v207
        %v1130 = vunpack.c.l.b16 %v208
        %v1131 = vpack.c.b16 %v1100, %v1099
        %v1132 = vpack.c.b16 %v1102, %v1101
        %v1133 = vpack.c.b16 %v1104, %v1103
        %v1134 = vpack.c.b16 %v1106, %v1105
        %v1135 = vpack.c.b16 %v1108, %v1107
        %v1136 = vpack.c.b16 %v1110, %v1109
        %v1137 = vpack.c.b16 %v1112, %v1111
        %v1138 = vpack.c.b16 %v1114, %v1113
        %v1139 = vpack.c.b16 %v1116, %v1115
        %v1140 = vpack.c.b16 %v1118, %v1117
        %v1141 = vpack.c.b16 %v1120, %v1119
        %v1142 = vpack.c.b16 %v1122, %v1121
        %v1143 = vpack.c.b16 %v1124, %v1123
        %v1144 = vpack.c.b16 %v1126, %v1125
        %v1145 = vpack.c.b16 %v1128, %v1127
        %v1146 = vpack.c.b16 %v1130, %v1129
        %v1148 = vsel %vm885, %v1131, 0
        %v1151 = vsel %vm885, %v1132, 0
        %v1154 = vsel %vm885, %v1133, 0
        %v1157 = vsel %vm885, %v1134, 0
        %v1160 = vsel %vm885, %v1135, 0
        %v1163 = vsel %vm885, %v1136, 0
        %v1166 = vsel %vm885, %v1137, 0
        %v1169 = vsel %vm885, %v1138, 0
        %v1172 = vsel %vm885, %v1139, 0
        %v1175 = vsel %vm885, %v1140, 0
        %v1178 = vsel %vm885, %v1141, 0
        %v1181 = vsel %vm885, %v1142, 0
        %v1184 = vsel %vm885, %v1143, 0
        %v1187 = vsel %vm885, %v1144, 0
        %v1190 = vsel %vm885, %v1145, 0
        %v1193 = vsel %vm885, %v1146, 0
        %v1196 = vsel %vm934, %v834, 0
        %1198 = vmatprep.subr.bf16.mxu0 0
        %1199 = vmatpush1.bf16.msra.mxu0 %v1196
        %1200 = vmatprep.subr.bf16.mxu0 0
        %1201 = vmatpush1.bf16.msra.mxu0 0
        %1202 = vmatprep.subr.bf16.mxu0 0
        %1203 = vmatpush1.bf16.msra.mxu0 0
        %1204 = vmatprep.subr.bf16.mxu0 0
        %1205 = vmatpush1.bf16.msra.mxu0 0
        %1206 = vmatprep.subr.bf16.mxu0 0
        %1207 = vmatpush1.bf16.msra.mxu0 0
        %1208 = vmatprep.subr.bf16.mxu0 0
        %1209 = vmatpush1.bf16.msra.mxu0 0
        %1210 = vmatprep.subr.bf16.mxu0 0
        %1211 = vmatpush1.bf16.msra.mxu0 0
        %1212 = vmatprep.subr.bf16.mxu0 0
        %1213 = vmatpush1.bf16.msra.mxu0 0
        %1214 = vmatprep.subr.bf16.mxu0 0
        %1215 = vmatpush1.bf16.msra.mxu0 0
        %1216 = vmatprep.subr.bf16.mxu0 0
        %1217 = vmatpush1.bf16.msra.mxu0 0
        %1218 = vmatprep.subr.bf16.mxu0 0
        %1219 = vmatpush1.bf16.msra.mxu0 0
        %1220 = vmatprep.subr.bf16.mxu0 0
        %1221 = vmatpush1.bf16.msra.mxu0 0
        %1222 = vmatprep.subr.bf16.mxu0 0
        %1223 = vmatpush1.bf16.msra.mxu0 0
        %1224 = vmatprep.subr.bf16.mxu0 0
        %1225 = vmatpush1.bf16.msra.mxu0 0
        %1226 = vmatprep.subr.bf16.mxu0 0
        %1227 = vmatpush1.bf16.msra.mxu0 0
        %1228 = vmatprep.subr.bf16.mxu0 0
        %1229 = vmatpush1.bf16.msra.mxu0 0
        %1230 = vmatprep.mubr.bf16.mxu0 0
        %1231 = vmatmul.mubr.bf16.gmra.mrb[0].mxu0 %v1148
        %v1232 = vpop.f32.mrb[0].mxu0
        %v1233 = vadd.f32 %v973, %v1232
        %v1234 = vpop.f32.mrb[0].mxu0
        %v1235 = vpop.f32.mrb[0].mxu0
        %v1236 = vadd.f32 %v976, %v1235
        %v1237 = vpop.f32.mrb[0].mxu0
        %1238 = vmatprep.mubr.bf16.mxu0 0
        %1239 = vmatmul.mubr.bf16.gmra.mrb[0].mxu0 %v1151
        %v1240 = vpop.f32.mrb[0].mxu0
        %v1241 = vadd.f32 %v981, %v1240
        %v1242 = vpop.f32.mrb[0].mxu0
        %v1243 = vpop.f32.mrb[0].mxu0
        %v1244 = vadd.f32 %v984, %v1243
        %v1245 = vpop.f32.mrb[0].mxu0
        %1246 = vmatprep.mubr.bf16.mxu0 0
        %1247 = vmatmul.mubr.bf16.gmra.mrb[0].mxu0 %v1154
        %v1248 = vpop.f32.mrb[0].mxu0
        %v1249 = vadd.f32 %v989, %v1248
        %v1250 = vpop.f32.mrb[0].mxu0
        %v1251 = vpop.f32.mrb[0].mxu0
        %v1252 = vadd.f32 %v992, %v1251
        %v1253 = vpop.f32.mrb[0].mxu0
        %1254 = vmatprep.mubr.bf16.mxu0 0
        %1255 = vmatmul.mubr.bf16.gmra.mrb[0].mxu0 %v1157
        %v1256 = vpop.f32.mrb[0].mxu0
        %v1257 = vadd.f32 %v997, %v1256
        %v1258 = vpop.f32.mrb[0].mxu0
        %v1259 = vpop.f32.mrb[0].mxu0
        %v1260 = vadd.f32 %v1000, %v1259
        %v1261 = vpop.f32.mrb[0].mxu0
        %1262 = vmatprep.mubr.bf16.mxu0 0
        %1263 = vmatmul.mubr.bf16.gmra.mrb[0].mxu0 %v1160
        %v1264 = vpop.f32.mrb[0].mxu0
        %v1265 = vadd.f32 %v1005, %v1264
        %v1266 = vpop.f32.mrb[0].mxu0
        %v1267 = vpop.f32.mrb[0].mxu0
        %v1268 = vadd.f32 %v1008, %v1267
        %v1269 = vpop.f32.mrb[0].mxu0
        %1270 = vmatprep.mubr.bf16.mxu0 0
        %1271 = vmatmul.mubr.bf16.gmra.mrb[0].mxu0 %v1163
        %v1272 = vpop.f32.mrb[0].mxu0
        %v1273 = vadd.f32 %v1013, %v1272
        %v1274 = vpop.f32.mrb[0].mxu0
        %v1275 = vpop.f32.mrb[0].mxu0
        %v1276 = vadd.f32 %v1016, %v1275
        %v1277 = vpop.f32.mrb[0].mxu0
        %1278 = vmatprep.mubr.bf16.mxu0 0
        %1279 = vmatmul.mubr.bf16.gmra.mrb[0].mxu0 %v1166
        %v1280 = vpop.f32.mrb[0].mxu0
        %v1281 = vadd.f32 %v1021, %v1280
        %v1282 = vpop.f32.mrb[0].mxu0
        %v1283 = vpop.f32.mrb[0].mxu0
        %v1284 = vadd.f32 %v1024, %v1283
        %v1285 = vpop.f32.mrb[0].mxu0
        %1286 = vmatprep.mubr.bf16.mxu0 0
        %1287 = vmatmul.mubr.bf16.gmra.mrb[0].mxu0 %v1169
        %v1288 = vpop.f32.mrb[0].mxu0
        %v1289 = vadd.f32 %v1029, %v1288
        %v1290 = vpop.f32.mrb[0].mxu0
        %v1291 = vpop.f32.mrb[0].mxu0
        %v1292 = vadd.f32 %v1032, %v1291
        %v1293 = vpop.f32.mrb[0].mxu0
        %1294 = vmatprep.mubr.bf16.mxu0 0
        %1295 = vmatmul.mubr.bf16.gmra.mrb[0].mxu0 %v1172
        %v1296 = vpop.f32.mrb[0].mxu0
        %v1297 = vadd.f32 %v1037, %v1296
        %v1298 = vpop.f32.mrb[0].mxu0
        %v1299 = vpop.f32.mrb[0].mxu0
        %v1300 = vadd.f32 %v1040, %v1299
        %v1301 = vpop.f32.mrb[0].mxu0
        %1302 = vmatprep.mubr.bf16.mxu0 0
        %1303 = vmatmul.mubr.bf16.gmra.mrb[0].mxu0 %v1175
        %v1304 = vpop.f32.mrb[0].mxu0
        %v1305 = vadd.f32 %v1045, %v1304
        %v1306 = vpop.f32.mrb[0].mxu0
        %v1307 = vpop.f32.mrb[0].mxu0
        %v1308 = vadd.f32 %v1048, %v1307
        %v1309 = vpop.f32.mrb[0].mxu0
        %1310 = vmatprep.mubr.bf16.mxu0 0
        %1311 = vmatmul.mubr.bf16.gmra.mrb[0].mxu0 %v1178
        %v1312 = vpop.f32.mrb[0].mxu0
        %v1313 = vadd.f32 %v1053, %v1312
        %v1314 = vpop.f32.mrb[0].mxu0
        %v1315 = vpop.f32.mrb[0].mxu0
        %v1316 = vadd.f32 %v1056, %v1315
        %v1317 = vpop.f32.mrb[0].mxu0
        %1318 = vmatprep.mubr.bf16.mxu0 0
        %1319 = vmatmul.mubr.bf16.gmra.mrb[0].mxu0 %v1181
        %v1320 = vpop.f32.mrb[0].mxu0
        %v1321 = vadd.f32 %v1061, %v1320
        %v1322 = vpop.f32.mrb[0].mxu0
        %v1323 = vpop.f32.mrb[0].mxu0
        %v1324 = vadd.f32 %v1064, %v1323
        %v1325 = vpop.f32.mrb[0].mxu0
        %1326 = vmatprep.mubr.bf16.mxu0 0
        %1327 = vmatmul.mubr.bf16.gmra.mrb[0].mxu0 %v1184
        %v1328 = vpop.f32.mrb[0].mxu0
        %v1329 = vadd.f32 %v1069, %v1328
        %v1330 = vpop.f32.mrb[0].mxu0
        %v1331 = vpop.f32.mrb[0].mxu0
        %v1332 = vadd.f32 %v1072, %v1331
        %v1333 = vpop.f32.mrb[0].mxu0
        %1334 = vmatprep.mubr.bf16.mxu0 0
        %1335 = vmatmul.mubr.bf16.gmra.mrb[0].mxu0 %v1187
        %v1336 = vpop.f32.mrb[0].mxu0
        %v1337 = vadd.f32 %v1077, %v1336
        %v1338 = vpop.f32.mrb[0].mxu0
        %v1339 = vpop.f32.mrb[0].mxu0
        %v1340 = vadd.f32 %v1080, %v1339
        %v1341 = vpop.f32.mrb[0].mxu0
        %1342 = vmatprep.mubr.bf16.mxu0 0
        %1343 = vmatmul.mubr.bf16.gmra.mrb[0].mxu0 %v1190
        %v1344 = vpop.f32.mrb[0].mxu0
        %v1345 = vadd.f32 %v1085, %v1344
        %v1346 = vpop.f32.mrb[0].mxu0
        %v1347 = vpop.f32.mrb[0].mxu0
        %v1348 = vadd.f32 %v1088, %v1347
        %v1349 = vpop.f32.mrb[0].mxu0
        %1350 = vmatprep.mubr.bf16.mxu0 0
        %1351 = vmatmul.mubr.bf16.gmra.mrb[0].mxu0 %v1193
        %v1352 = vpop.f32.mrb[0].mxu0
        %v1353 = vadd.f32 %v1093, %v1352
        %v1354 = vpop.f32.mrb[0].mxu0
        %v1355 = vpop.f32.mrb[0].mxu0
        %v1356 = vadd.f32 %v1096, %v1355
        %v1357 = vpop.f32.mrb[0].mxu0
        %1358 = vdwg.mxu0
        %s1359 = scalar_lea.vmem %s1, 4
        %v1360 = vld [vmem:[%s1359] sm:$0x3]
        %v1361 = vunpack.c.l.b16 %v657
        %v1362 = vunpack.c.l.b16 %v660
        %v1363 = vunpack.c.l.b16 %v664
        %v1364 = vunpack.c.l.b16 %v667
        %v1365 = vunpack.c.l.b16 %v671
        %v1366 = vunpack.c.l.b16 %v674
        %v1367 = vunpack.c.l.b16 %v678
        %v1368 = vunpack.c.l.b16 %v681
        %v1369 = vunpack.c.l.b16 %v685
        %v1370 = vunpack.c.l.b16 %v688
        %v1371 = vunpack.c.l.b16 %v692
        %v1372 = vunpack.c.l.b16 %v695
        %v1373 = vunpack.c.l.b16 %v699
        %v1374 = vunpack.c.l.b16 %v702
        %v1375 = vunpack.c.l.b16 %v706
        %v1376 = vunpack.c.l.b16 %v709
        %v1377 = vunpack.c.l.b16 %v713
        %v1378 = vunpack.c.l.b16 %v716
        %v1379 = vunpack.c.l.b16 %v720
        %v1380 = vunpack.c.l.b16 %v723
        %v1381 = vunpack.c.l.b16 %v727
        %v1382 = vunpack.c.l.b16 %v730
        %v1383 = vunpack.c.l.b16 %v734
        %v1384 = vunpack.c.l.b16 %v737
        %v1385 = vunpack.c.l.b16 %v741
        %v1386 = vunpack.c.l.b16 %v744
        %v1387 = vunpack.c.l.b16 %v748
        %v1388 = vunpack.c.l.b16 %v751
        %v1389 = vunpack.c.l.b16 %v755
        %v1390 = vunpack.c.l.b16 %v758
        %v1391 = vunpack.c.l.b16 %v762
        %v1392 = vunpack.c.l.b16 %v765
        %v1393 = vpack.c.b16 %v1362, %v1361
        %v1394 = vpack.c.b16 %v1364, %v1363
        %v1395 = vpack.c.b16 %v1366, %v1365
        %v1396 = vpack.c.b16 %v1368, %v1367
        %v1397 = vpack.c.b16 %v1370, %v1369
        %v1398 = vpack.c.b16 %v1372, %v1371
        %v1399 = vpack.c.b16 %v1374, %v1373
        %v1400 = vpack.c.b16 %v1376, %v1375
        %v1401 = vpack.c.b16 %v1378, %v1377
        %v1402 = vpack.c.b16 %v1380, %v1379
        %v1403 = vpack.c.b16 %v1382, %v1381
        %v1404 = vpack.c.b16 %v1384, %v1383
        %v1405 = vpack.c.b16 %v1386, %v1385
        %v1406 = vpack.c.b16 %v1388, %v1387
        %v1407 = vpack.c.b16 %v1390, %v1389
        %v1408 = vpack.c.b16 %v1392, %v1391
        %v1410 = vsel %vm885, %v1393, 0
        %v1413 = vsel %vm885, %v1394, 0
        %v1416 = vsel %vm885, %v1395, 0
        %v1419 = vsel %vm885, %v1396, 0
        %v1422 = vsel %vm885, %v1397, 0
        %v1425 = vsel %vm885, %v1398, 0
        %v1428 = vsel %vm885, %v1399, 0
        %v1431 = vsel %vm885, %v1400, 0
        %v1434 = vsel %vm885, %v1401, 0
        %v1437 = vsel %vm885, %v1402, 0
        %v1440 = vsel %vm885, %v1403, 0
        %v1443 = vsel %vm885, %v1404, 0
        %v1446 = vsel %vm885, %v1405, 0
        %v1449 = vsel %vm885, %v1406, 0
        %v1452 = vsel %vm885, %v1407, 0
        %v1455 = vsel %vm885, %v1408, 0
        %v1458 = vsel %vm934, %v1360, 0
        %1460 = vmatprep.subr.bf16.mxu0 0
        %1461 = vmatpush1.bf16.msra.mxu0 %v1458
        %1462 = vmatprep.subr.bf16.mxu0 0
        %1463 = vmatpush1.bf16.msra.mxu0 0
        %1464 = vmatprep.subr.bf16.mxu0 0
        %1465 = vmatpush1.bf16.msra.mxu0 0
        %1466 = vmatprep.subr.bf16.mxu0 0
        %1467 = vmatpush1.bf16.msra.mxu0 0
        %1468 = vmatprep.subr.bf16.mxu0 0
        %1469 = vmatpush1.bf16.msra.mxu0 0
        %1470 = vmatprep.subr.bf16.mxu0 0
        %1471 = vmatpush1.bf16.msra.mxu0 0
        %1472 = vmatprep.subr.bf16.mxu0 0
        %1473 = vmatpush1.bf16.msra.mxu0 0
        %1474 = vmatprep.subr.bf16.mxu0 0
        %1475 = vmatpush1.bf16.msra.mxu0 0
        %1476 = vmatprep.subr.bf16.mxu0 0
        %1477 = vmatpush1.bf16.msra.mxu0 0
        %1478 = vmatprep.subr.bf16.mxu0 0
        %1479 = vmatpush1.bf16.msra.mxu0 0
        %1480 = vmatprep.subr.bf16.mxu0 0
        %1481 = vmatpush1.bf16.msra.mxu0 0
        %1482 = vmatprep.subr.bf16.mxu0 0
        %1483 = vmatpush1.bf16.msra.mxu0 0
        %1484 = vmatprep.subr.bf16.mxu0 0
        %1485 = vmatpush1.bf16.msra.mxu0 0
        %1486 = vmatprep.subr.bf16.mxu0 0
        %1487 = vmatpush1.bf16.msra.mxu0 0
        %1488 = vmatprep.subr.bf16.mxu0 0
        %1489 = vmatpush1.bf16.msra.mxu0 0
        %1490 = vmatprep.subr.bf16.mxu0 0
        %1491 = vmatpush1.bf16.msra.mxu0 0
        %1492 = vmatprep.mubr.bf16.mxu0 0
        %1493 = vmatmul.mubr.bf16.gmra.mrb[0].mxu0 %v1410
        %v1494 = vpop.f32.mrb[0].mxu0
        %v1495 = vadd.f32 0.0, %v1494
        %v1496 = vpop.f32.mrb[0].mxu0
        %v1497 = vpop.f32.mrb[0].mxu0
        %v1498 = vadd.f32 0.0, %v1497
        %v1499 = vpop.f32.mrb[0].mxu0
        %1500 = vmatprep.mubr.bf16.mxu0 0
        %1501 = vmatmul.mubr.bf16.gmra.mrb[0].mxu0 %v1413
        %v1502 = vpop.f32.mrb[0].mxu0
        %v1503 = vadd.f32 0.0, %v1502
        %v1504 = vpop.f32.mrb[0].mxu0
        %v1505 = vpop.f32.mrb[0].mxu0
        %v1506 = vadd.f32 0.0, %v1505
        %v1507 = vpop.f32.mrb[0].mxu0
        %1508 = vmatprep.mubr.bf16.mxu0 0
        %1509 = vmatmul.mubr.bf16.gmra.mrb[0].mxu0 %v1416
        %v1510 = vpop.f32.mrb[0].mxu0
        %v1511 = vadd.f32 0.0, %v1510
        %v1512 = vpop.f32.mrb[0].mxu0
        %v1513 = vpop.f32.mrb[0].mxu0
        %v1514 = vadd.f32 0.0, %v1513
        %v1515 = vpop.f32.mrb[0].mxu0
        %1516 = vmatprep.mubr.bf16.mxu0 0
        %1517 = vmatmul.mubr.bf16.gmra.mrb[0].mxu0 %v1419
        %v1518 = vpop.f32.mrb[0].mxu0
        %v1519 = vadd.f32 0.0, %v1518
        %v1520 = vpop.f32.mrb[0].mxu0
        %v1521 = vpop.f32.mrb[0].mxu0
        %v1522 = vadd.f32 0.0, %v1521
        %v1523 = vpop.f32.mrb[0].mxu0
        %1524 = vmatprep.mubr.bf16.mxu0 0
        %1525 = vmatmul.mubr.bf16.gmra.mrb[0].mxu0 %v1422
        %v1526 = vpop.f32.mrb[0].mxu0
        %v1527 = vadd.f32 0.0, %v1526
        %v1528 = vpop.f32.mrb[0].mxu0
        %v1529 = vpop.f32.mrb[0].mxu0
        %v1530 = vadd.f32 0.0, %v1529
        %v1531 = vpop.f32.mrb[0].mxu0
        %1532 = vmatprep.mubr.bf16.mxu0 0
        %1533 = vmatmul.mubr.bf16.gmra.mrb[0].mxu0 %v1425
        %v1534 = vpop.f32.mrb[0].mxu0
        %v1535 = vadd.f32 0.0, %v1534
        %v1536 = vpop.f32.mrb[0].mxu0
        %v1537 = vpop.f32.mrb[0].mxu0
        %v1538 = vadd.f32 0.0, %v1537
        %v1539 = vpop.f32.mrb[0].mxu0
        %1540 = vmatprep.mubr.bf16.mxu0 0
        %1541 = vmatmul.mubr.bf16.gmra.mrb[0].mxu0 %v1428
        %v1542 = vpop.f32.mrb[0].mxu0
        %v1543 = vadd.f32 0.0, %v1542
        %v1544 = vpop.f32.mrb[0].mxu0
        %v1545 = vpop.f32.mrb[0].mxu0
        %v1546 = vadd.f32 0.0, %v1545
        %v1547 = vpop.f32.mrb[0].mxu0
        %1548 = vmatprep.mubr.bf16.mxu0 0
        %1549 = vmatmul.mubr.bf16.gmra.mrb[0].mxu0 %v1431
        %v1550 = vpop.f32.mrb[0].mxu0
        %v1551 = vadd.f32 0.0, %v1550
        %v1552 = vpop.f32.mrb[0].mxu0
        %v1553 = vpop.f32.mrb[0].mxu0
        %v1554 = vadd.f32 0.0, %v1553
        %v1555 = vpop.f32.mrb[0].mxu0
        %1556 = vmatprep.mubr.bf16.mxu0 0
        %1557 = vmatmul.mubr.bf16.gmra.mrb[0].mxu0 %v1434
        %v1558 = vpop.f32.mrb[0].mxu0
        %v1559 = vadd.f32 0.0, %v1558
        %v1560 = vpop.f32.mrb[0].mxu0
        %v1561 = vpop.f32.mrb[0].mxu0
        %v1562 = vadd.f32 0.0, %v1561
        %v1563 = vpop.f32.mrb[0].mxu0
        %1564 = vmatprep.mubr.bf16.mxu0 0
        %1565 = vmatmul.mubr.bf16.gmra.mrb[0].mxu0 %v1437
        %v1566 = vpop.f32.mrb[0].mxu0
        %v1567 = vadd.f32 0.0, %v1566
        %v1568 = vpop.f32.mrb[0].mxu0
        %v1569 = vpop.f32.mrb[0].mxu0
        %v1570 = vadd.f32 0.0, %v1569
        %v1571 = vpop.f32.mrb[0].mxu0
        %1572 = vmatprep.mubr.bf16.mxu0 0
        %1573 = vmatmul.mubr.bf16.gmra.mrb[0].mxu0 %v1440
        %v1574 = vpop.f32.mrb[0].mxu0
        %v1575 = vadd.f32 0.0, %v1574
        %v1576 = vpop.f32.mrb[0].mxu0
        %v1577 = vpop.f32.mrb[0].mxu0
        %v1578 = vadd.f32 0.0, %v1577
        %v1579 = vpop.f32.mrb[0].mxu0
        %1580 = vmatprep.mubr.bf16.mxu0 0
        %1581 = vmatmul.mubr.bf16.gmra.mrb[0].mxu0 %v1443
        %v1582 = vpop.f32.mrb[0].mxu0
        %v1583 = vadd.f32 0.0, %v1582
        %v1584 = vpop.f32.mrb[0].mxu0
        %v1585 = vpop.f32.mrb[0].mxu0
        %v1586 = vadd.f32 0.0, %v1585
        %v1587 = vpop.f32.mrb[0].mxu0
        %1588 = vmatprep.mubr.bf16.mxu0 0
        %1589 = vmatmul.mubr.bf16.gmra.mrb[0].mxu0 %v1446
        %v1590 = vpop.f32.mrb[0].mxu0
        %v1591 = vadd.f32 0.0, %v1590
        %v1592 = vpop.f32.mrb[0].mxu0
        %v1593 = vpop.f32.mrb[0].mxu0
        %v1594 = vadd.f32 0.0, %v1593
        %v1595 = vpop.f32.mrb[0].mxu0
        %1596 = vmatprep.mubr.bf16.mxu0 0
        %1597 = vmatmul.mubr.bf16.gmra.mrb[0].mxu0 %v1449
        %v1598 = vpop.f32.mrb[0].mxu0
        %v1599 = vadd.f32 0.0, %v1598
        %v1600 = vpop.f32.mrb[0].mxu0
        %v1601 = vpop.f32.mrb[0].mxu0
        %v1602 = vadd.f32 0.0, %v1601
        %v1603 = vpop.f32.mrb[0].mxu0
        %1604 = vmatprep.mubr.bf16.mxu0 0
        %1605 = vmatmul.mubr.bf16.gmra.mrb[0].mxu0 %v1452
        %v1606 = vpop.f32.mrb[0].mxu0
        %v1607 = vadd.f32 0.0, %v1606
        %v1608 = vpop.f32.mrb[0].mxu0
        %v1609 = vpop.f32.mrb[0].mxu0
        %v1610 = vadd.f32 0.0, %v1609
        %v1611 = vpop.f32.mrb[0].mxu0
        %1612 = vmatprep.mubr.bf16.mxu0 0
        %1613 = vmatmul.mubr.bf16.gmra.mrb[0].mxu0 %v1455
        %v1614 = vpop.f32.mrb[0].mxu0
        %v1615 = vadd.f32 0.0, %v1614
        %v1616 = vpop.f32.mrb[0].mxu0
        %v1617 = vpop.f32.mrb[0].mxu0
        %v1618 = vadd.f32 0.0, %v1617
        %v1619 = vpop.f32.mrb[0].mxu0
        %1620 = vdwg.mxu0
        %v1621 = vadd.f32 %v1233, %v1495
        %v1622 = vadd.f32 %v1236, %v1498
        %v1623 = vadd.f32 %v1241, %v1503
        %v1624 = vadd.f32 %v1244, %v1506
        %v1625 = vadd.f32 %v1249, %v1511
        %v1626 = vadd.f32 %v1252, %v1514
        %v1627 = vadd.f32 %v1257, %v1519
        %v1628 = vadd.f32 %v1260, %v1522
        %v1629 = vadd.f32 %v1265, %v1527
        %v1630 = vadd.f32 %v1268, %v1530
        %v1631 = vadd.f32 %v1273, %v1535
        %v1632 = vadd.f32 %v1276, %v1538
        %v1633 = vadd.f32 %v1281, %v1543
        %v1634 = vadd.f32 %v1284, %v1546
        %v1635 = vadd.f32 %v1289, %v1551
        %v1636 = vadd.f32 %v1292, %v1554
        %v1637 = vadd.f32 %v1297, %v1559
        %v1638 = vadd.f32 %v1300, %v1562
        %v1639 = vadd.f32 %v1305, %v1567
        %v1640 = vadd.f32 %v1308, %v1570
        %v1641 = vadd.f32 %v1313, %v1575
        %v1642 = vadd.f32 %v1316, %v1578
        %v1643 = vadd.f32 %v1321, %v1583
        %v1644 = vadd.f32 %v1324, %v1586
        %v1645 = vadd.f32 %v1329, %v1591
        %v1646 = vadd.f32 %v1332, %v1594
        %v1647 = vadd.f32 %v1337, %v1599
        %v1648 = vadd.f32 %v1340, %v1602
        %v1649 = vadd.f32 %v1345, %v1607
        %v1650 = vadd.f32 %v1348, %v1610
        %v1651 = vadd.f32 %v1353, %v1615
        %v1652 = vadd.f32 %v1356, %v1618
        %s1653 = scalar_lea.vmem %s1, 6
        %v1654 = vld [vmem:[%s1653] sm:$0x3]
        %v1655 = vunpack.c.l.b16 %v210
        %v1656 = vunpack.c.l.b16 %v211
        %v1657 = vpack.c.b16 %v1656, %v1655
        %v1659 = vsel %vm885, %v1657, 0
        %v1662 = vsel %vm934, %v1654, 0
        %1664 = vmatprep.subr.bf16.mxu0 0
        %1665 = vmatpush1.bf16.msra.mxu0 %v1662
        %1666 = vmatprep.subr.bf16.mxu0 0
        %1667 = vmatpush1.bf16.msra.mxu0 0
        %1668 = vmatprep.subr.bf16.mxu0 0
        %1669 = vmatpush1.bf16.msra.mxu0 0
        %1670 = vmatprep.subr.bf16.mxu0 0
        %1671 = vmatpush1.bf16.msra.mxu0 0
        %1672 = vmatprep.subr.bf16.mxu0 0
        %1673 = vmatpush1.bf16.msra.mxu0 0
        %1674 = vmatprep.subr.bf16.mxu0 0
        %1675 = vmatpush1.bf16.msra.mxu0 0
        %1676 = vmatprep.subr.bf16.mxu0 0
        %1677 = vmatpush1.bf16.msra.mxu0 0
        %1678 = vmatprep.subr.bf16.mxu0 0
        %1679 = vmatpush1.bf16.msra.mxu0 0
        %1680 = vmatprep.subr.bf16.mxu0 0
        %1681 = vmatpush1.bf16.msra.mxu0 0
        %1682 = vmatprep.subr.bf16.mxu0 0
        %1683 = vmatpush1.bf16.msra.mxu0 0
        %1684 = vmatprep.subr.bf16.mxu0 0
        %1685 = vmatpush1.bf16.msra.mxu0 0
        %1686 = vmatprep.subr.bf16.mxu0 0
        %1687 = vmatpush1.bf16.msra.mxu0 0
        %1688 = vmatprep.subr.bf16.mxu0 0
        %1689 = vmatpush1.bf16.msra.mxu0 0
        %1690 = vmatprep.subr.bf16.mxu0 0
        %1691 = vmatpush1.bf16.msra.mxu0 0
        %1692 = vmatprep.subr.bf16.mxu0 0
        %1693 = vmatpush1.bf16.msra.mxu0 0
        %1694 = vmatprep.subr.bf16.mxu0 0
        %1695 = vmatpush1.bf16.msra.mxu0 0
        %1696 = vmatprep.mubr.bf16.mxu0 0
        %1697 = vmatmul.mubr.bf16.gmra.mrb[0].mxu0 %v1151
        %v1698 = vpop.f32.mrb[0].mxu0
        %v1699 = vadd.f32 0.0, %v1698
        %v1700 = vpop.f32.mrb[0].mxu0
        %v1701 = vpop.f32.mrb[0].mxu0
        %v1702 = vadd.f32 0.0, %v1701
        %v1703 = vpop.f32.mrb[0].mxu0
        %1704 = vmatprep.mubr.bf16.mxu0 0
        %1705 = vmatmul.mubr.bf16.gmra.mrb[0].mxu0 %v1154
        %v1706 = vpop.f32.mrb[0].mxu0
        %v1707 = vadd.f32 0.0, %v1706
        %v1708 = vpop.f32.mrb[0].mxu0
        %v1709 = vpop.f32.mrb[0].mxu0
        %v1710 = vadd.f32 0.0, %v1709
        %v1711 = vpop.f32.mrb[0].mxu0
        %1712 = vmatprep.mubr.bf16.mxu0 0
        %1713 = vmatmul.mubr.bf16.gmra.mrb[0].mxu0 %v1157
        %v1714 = vpop.f32.mrb[0].mxu0
        %v1715 = vadd.f32 0.0, %v1714
        %v1716 = vpop.f32.mrb[0].mxu0
        %v1717 = vpop.f32.mrb[0].mxu0
        %v1718 = vadd.f32 0.0, %v1717
        %v1719 = vpop.f32.mrb[0].mxu0
        %1720 = vmatprep.mubr.bf16.mxu0 0
        %1721 = vmatmul.mubr.bf16.gmra.mrb[0].mxu0 %v1160
        %v1722 = vpop.f32.mrb[0].mxu0
        %v1723 = vadd.f32 0.0, %v1722
        %v1724 = vpop.f32.mrb[0].mxu0
        %v1725 = vpop.f32.mrb[0].mxu0
        %v1726 = vadd.f32 0.0, %v1725
        %v1727 = vpop.f32.mrb[0].mxu0
        %1728 = vmatprep.mubr.bf16.mxu0 0
        %1729 = vmatmul.mubr.bf16.gmra.mrb[0].mxu0 %v1163
        %v1730 = vpop.f32.mrb[0].mxu0
        %v1731 = vadd.f32 0.0, %v1730
        %v1732 = vpop.f32.mrb[0].mxu0
        %v1733 = vpop.f32.mrb[0].mxu0
        %v1734 = vadd.f32 0.0, %v1733
        %v1735 = vpop.f32.mrb[0].mxu0
        %1736 = vmatprep.mubr.bf16.mxu0 0
        %1737 = vmatmul.mubr.bf16.gmra.mrb[0].mxu0 %v1166
        %v1738 = vpop.f32.mrb[0].mxu0
        %v1739 = vadd.f32 0.0, %v1738
        %v1740 = vpop.f32.mrb[0].mxu0
        %v1741 = vpop.f32.mrb[0].mxu0
        %v1742 = vadd.f32 0.0, %v1741
        %v1743 = vpop.f32.mrb[0].mxu0
        %1744 = vmatprep.mubr.bf16.mxu0 0
        %1745 = vmatmul.mubr.bf16.gmra.mrb[0].mxu0 %v1169
        %v1746 = vpop.f32.mrb[0].mxu0
        %v1747 = vadd.f32 0.0, %v1746
        %v1748 = vpop.f32.mrb[0].mxu0
        %v1749 = vpop.f32.mrb[0].mxu0
        %v1750 = vadd.f32 0.0, %v1749
        %v1751 = vpop.f32.mrb[0].mxu0
        %1752 = vmatprep.mubr.bf16.mxu0 0
        %1753 = vmatmul.mubr.bf16.gmra.mrb[0].mxu0 %v1172
        %v1754 = vpop.f32.mrb[0].mxu0
        %v1755 = vadd.f32 0.0, %v1754
        %v1756 = vpop.f32.mrb[0].mxu0
        %v1757 = vpop.f32.mrb[0].mxu0
        %v1758 = vadd.f32 0.0, %v1757
        %v1759 = vpop.f32.mrb[0].mxu0
        %1760 = vmatprep.mubr.bf16.mxu0 0
        %1761 = vmatmul.mubr.bf16.gmra.mrb[0].mxu0 %v1175
        %v1762 = vpop.f32.mrb[0].mxu0
        %v1763 = vadd.f32 0.0, %v1762
        %v1764 = vpop.f32.mrb[0].mxu0
        %v1765 = vpop.f32.mrb[0].mxu0
        %v1766 = vadd.f32 0.0, %v1765
        %v1767 = vpop.f32.mrb[0].mxu0
        %1768 = vmatprep.mubr.bf16.mxu0 0
        %1769 = vmatmul.mubr.bf16.gmra.mrb[0].mxu0 %v1178
        %v1770 = vpop.f32.mrb[0].mxu0
        %v1771 = vadd.f32 0.0, %v1770
        %v1772 = vpop.f32.mrb[0].mxu0
        %v1773 = vpop.f32.mrb[0].mxu0
        %v1774 = vadd.f32 0.0, %v1773
        %v1775 = vpop.f32.mrb[0].mxu0
        %1776 = vmatprep.mubr.bf16.mxu0 0
        %1777 = vmatmul.mubr.bf16.gmra.mrb[0].mxu0 %v1181
        %v1778 = vpop.f32.mrb[0].mxu0
        %v1779 = vadd.f32 0.0, %v1778
        %v1780 = vpop.f32.mrb[0].mxu0
        %v1781 = vpop.f32.mrb[0].mxu0
        %v1782 = vadd.f32 0.0, %v1781
        %v1783 = vpop.f32.mrb[0].mxu0
        %1784 = vmatprep.mubr.bf16.mxu0 0
        %1785 = vmatmul.mubr.bf16.gmra.mrb[0].mxu0 %v1184
        %v1786 = vpop.f32.mrb[0].mxu0
        %v1787 = vadd.f32 0.0, %v1786
        %v1788 = vpop.f32.mrb[0].mxu0
        %v1789 = vpop.f32.mrb[0].mxu0
        %v1790 = vadd.f32 0.0, %v1789
        %v1791 = vpop.f32.mrb[0].mxu0
        %1792 = vmatprep.mubr.bf16.mxu0 0
        %1793 = vmatmul.mubr.bf16.gmra.mrb[0].mxu0 %v1187
        %v1794 = vpop.f32.mrb[0].mxu0
        %v1795 = vadd.f32 0.0, %v1794
        %v1796 = vpop.f32.mrb[0].mxu0
        %v1797 = vpop.f32.mrb[0].mxu0
        %v1798 = vadd.f32 0.0, %v1797
        %v1799 = vpop.f32.mrb[0].mxu0
        %1800 = vmatprep.mubr.bf16.mxu0 0
        %1801 = vmatmul.mubr.bf16.gmra.mrb[0].mxu0 %v1190
        %v1802 = vpop.f32.mrb[0].mxu0
        %v1803 = vadd.f32 0.0, %v1802
        %v1804 = vpop.f32.mrb[0].mxu0
        %v1805 = vpop.f32.mrb[0].mxu0
        %v1806 = vadd.f32 0.0, %v1805
        %v1807 = vpop.f32.mrb[0].mxu0
        %1808 = vmatprep.mubr.bf16.mxu0 0
        %1809 = vmatmul.mubr.bf16.gmra.mrb[0].mxu0 %v1193
        %v1810 = vpop.f32.mrb[0].mxu0
        %v1811 = vadd.f32 0.0, %v1810
        %v1812 = vpop.f32.mrb[0].mxu0
        %v1813 = vpop.f32.mrb[0].mxu0
        %v1814 = vadd.f32 0.0, %v1813
        %v1815 = vpop.f32.mrb[0].mxu0
        %1816 = vmatprep.mubr.bf16.mxu0 0
        %1817 = vmatmul.mubr.bf16.gmra.mrb[0].mxu0 %v1659
        %v1818 = vpop.f32.mrb[0].mxu0
        %v1819 = vadd.f32 0.0, %v1818
        %v1820 = vpop.f32.mrb[0].mxu0
        %v1821 = vpop.f32.mrb[0].mxu0
        %v1822 = vadd.f32 0.0, %v1821
        %v1823 = vpop.f32.mrb[0].mxu0
        %1824 = vdwg.mxu0
        %v1825 = vadd.f32 %v1621, %v1699
        %v1826 = vadd.f32 %v1622, %v1702
        %v1827 = vadd.f32 %v1623, %v1707
        %v1828 = vadd.f32 %v1624, %v1710
        %v1829 = vadd.f32 %v1625, %v1715
        %v1830 = vadd.f32 %v1626, %v1718
        %v1831 = vadd.f32 %v1627, %v1723
        %v1832 = vadd.f32 %v1628, %v1726
        %v1833 = vadd.f32 %v1629, %v1731
        %v1834 = vadd.f32 %v1630, %v1734
        %v1835 = vadd.f32 %v1631, %v1739
        %v1836 = vadd.f32 %v1632, %v1742
        %v1837 = vadd.f32 %v1633, %v1747
        %v1838 = vadd.f32 %v1634, %v1750
        %v1839 = vadd.f32 %v1635, %v1755
        %v1840 = vadd.f32 %v1636, %v1758
        %v1841 = vadd.f32 %v1637, %v1763
        %v1842 = vadd.f32 %v1638, %v1766
        %v1843 = vadd.f32 %v1639, %v1771
        %v1844 = vadd.f32 %v1640, %v1774
        %v1845 = vadd.f32 %v1641, %v1779
        %v1846 = vadd.f32 %v1642, %v1782
        %v1847 = vadd.f32 %v1643, %v1787
        %v1848 = vadd.f32 %v1644, %v1790
        %v1849 = vadd.f32 %v1645, %v1795
        %v1850 = vadd.f32 %v1646, %v1798
        %v1851 = vadd.f32 %v1647, %v1803
        %v1852 = vadd.f32 %v1648, %v1806
        %v1853 = vadd.f32 %v1649, %v1811
        %v1854 = vadd.f32 %v1650, %v1814
        %v1855 = vadd.f32 %v1651, %v1819
        %v1856 = vadd.f32 %v1652, %v1822
        %s1857 = scalar_lea.vmem %s1, 8
        %v1858 = vld [vmem:[%s1857] sm:$0x3]
        %v1859 = vunpack.c.l.b16 %v779
        %v1860 = vunpack.c.l.b16 %v789
        %v1861 = vpack.c.b16 %v1860, %v1859
        %v1863 = vsel %vm885, %v1861, 0
        %v1866 = vsel %vm934, %v1858, 0
        %1868 = vmatprep.subr.bf16.mxu0 0
        %1869 = vmatpush1.bf16.msra.mxu0 %v1866
        %1870 = vmatprep.subr.bf16.mxu0 0
        %1871 = vmatpush1.bf16.msra.mxu0 0
        %1872 = vmatprep.subr.bf16.mxu0 0
        %1873 = vmatpush1.bf16.msra.mxu0 0
        %1874 = vmatprep.subr.bf16.mxu0 0
        %1875 = vmatpush1.bf16.msra.mxu0 0
        %1876 = vmatprep.subr.bf16.mxu0 0
        %1877 = vmatpush1.bf16.msra.mxu0 0
        %1878 = vmatprep.subr.bf16.mxu0 0
        %1879 = vmatpush1.bf16.msra.mxu0 0
        %1880 = vmatprep.subr.bf16.mxu0 0
        %1881 = vmatpush1.bf16.msra.mxu0 0
        %1882 = vmatprep.subr.bf16.mxu0 0
        %1883 = vmatpush1.bf16.msra.mxu0 0
        %1884 = vmatprep.subr.bf16.mxu0 0
        %1885 = vmatpush1.bf16.msra.mxu0 0
        %1886 = vmatprep.subr.bf16.mxu0 0
        %1887 = vmatpush1.bf16.msra.mxu0 0
        %1888 = vmatprep.subr.bf16.mxu0 0
        %1889 = vmatpush1.bf16.msra.mxu0 0
        %1890 = vmatprep.subr.bf16.mxu0 0
        %1891 = vmatpush1.bf16.msra.mxu0 0
        %1892 = vmatprep.subr.bf16.mxu0 0
        %1893 = vmatpush1.bf16.msra.mxu0 0
        %1894 = vmatprep.subr.bf16.mxu0 0
        %1895 = vmatpush1.bf16.msra.mxu0 0
        %1896 = vmatprep.subr.bf16.mxu0 0
        %1897 = vmatpush1.bf16.msra.mxu0 0
        %1898 = vmatprep.subr.bf16.mxu0 0
        %1899 = vmatpush1.bf16.msra.mxu0 0
        %1900 = vmatprep.mubr.bf16.mxu0 0
        %1901 = vmatmul.mubr.bf16.gmra.mrb[0].mxu0 %v890
        %v1902 = vpop.f32.mrb[0].mxu0
        %v1903 = vadd.f32 0.0, %v1902
        %v1904 = vpop.f32.mrb[0].mxu0
        %v1905 = vpop.f32.mrb[0].mxu0
        %v1906 = vadd.f32 0.0, %v1905
        %v1907 = vpop.f32.mrb[0].mxu0
        %1908 = vmatprep.mubr.bf16.mxu0 0
        %1909 = vmatmul.mubr.bf16.gmra.mrb[0].mxu0 %v893
        %v1910 = vpop.f32.mrb[0].mxu0
        %v1911 = vadd.f32 0.0, %v1910
        %v1912 = vpop.f32.mrb[0].mxu0
        %v1913 = vpop.f32.mrb[0].mxu0
        %v1914 = vadd.f32 0.0, %v1913
        %v1915 = vpop.f32.mrb[0].mxu0
        %1916 = vmatprep.mubr.bf16.mxu0 0
        %1917 = vmatmul.mubr.bf16.gmra.mrb[0].mxu0 %v896
        %v1918 = vpop.f32.mrb[0].mxu0
        %v1919 = vadd.f32 0.0, %v1918
        %v1920 = vpop.f32.mrb[0].mxu0
        %v1921 = vpop.f32.mrb[0].mxu0
        %v1922 = vadd.f32 0.0, %v1921
        %v1923 = vpop.f32.mrb[0].mxu0
        %1924 = vmatprep.mubr.bf16.mxu0 0
        %1925 = vmatmul.mubr.bf16.gmra.mrb[0].mxu0 %v899
        %v1926 = vpop.f32.mrb[0].mxu0
        %v1927 = vadd.f32 0.0, %v1926
        %v1928 = vpop.f32.mrb[0].mxu0
        %v1929 = vpop.f32.mrb[0].mxu0
        %v1930 = vadd.f32 0.0, %v1929
        %v1931 = vpop.f32.mrb[0].mxu0
        %1932 = vmatprep.mubr.bf16.mxu0 0
        %1933 = vmatmul.mubr.bf16.gmra.mrb[0].mxu0 %v902
        %v1934 = vpop.f32.mrb[0].mxu0
        %v1935 = vadd.f32 0.0, %v1934
        %v1936 = vpop.f32.mrb[0].mxu0
        %v1937 = vpop.f32.mrb[0].mxu0
        %v1938 = vadd.f32 0.0, %v1937
        %v1939 = vpop.f32.mrb[0].mxu0
        %1940 = vmatprep.mubr.bf16.mxu0 0
        %1941 = vmatmul.mubr.bf16.gmra.mrb[0].mxu0 %v905
        %v1942 = vpop.f32.mrb[0].mxu0
        %v1943 = vadd.f32 0.0, %v1942
        %v1944 = vpop.f32.mrb[0].mxu0
        %v1945 = vpop.f32.mrb[0].mxu0
        %v1946 = vadd.f32 0.0, %v1945
        %v1947 = vpop.f32.mrb[0].mxu0
        %1948 = vmatprep.mubr.bf16.mxu0 0
        %1949 = vmatmul.mubr.bf16.gmra.mrb[0].mxu0 %v908
        %v1950 = vpop.f32.mrb[0].mxu0
        %v1951 = vadd.f32 0.0, %v1950
        %v1952 = vpop.f32.mrb[0].mxu0
        %v1953 = vpop.f32.mrb[0].mxu0
        %v1954 = vadd.f32 0.0, %v1953
        %v1955 = vpop.f32.mrb[0].mxu0
        %1956 = vmatprep.mubr.bf16.mxu0 0
        %1957 = vmatmul.mubr.bf16.gmra.mrb[0].mxu0 %v911
        %v1958 = vpop.f32.mrb[0].mxu0
        %v1959 = vadd.f32 0.0, %v1958
        %v1960 = vpop.f32.mrb[0].mxu0
        %v1961 = vpop.f32.mrb[0].mxu0
        %v1962 = vadd.f32 0.0, %v1961
        %v1963 = vpop.f32.mrb[0].mxu0
        %1964 = vmatprep.mubr.bf16.mxu0 0
        %1965 = vmatmul.mubr.bf16.gmra.mrb[0].mxu0 %v914
        %v1966 = vpop.f32.mrb[0].mxu0
        %v1967 = vadd.f32 0.0, %v1966
        %v1968 = vpop.f32.mrb[0].mxu0
        %v1969 = vpop.f32.mrb[0].mxu0
        %v1970 = vadd.f32 0.0, %v1969
        %v1971 = vpop.f32.mrb[0].mxu0
        %1972 = vmatprep.mubr.bf16.mxu0 0
        %1973 = vmatmul.mubr.bf16.gmra.mrb[0].mxu0 %v917
        %v1974 = vpop.f32.mrb[0].mxu0
        %v1975 = vadd.f32 0.0, %v1974
        %v1976 = vpop.f32.mrb[0].mxu0
        %v1977 = vpop.f32.mrb[0].mxu0
        %v1978 = vadd.f32 0.0, %v1977
        %v1979 = vpop.f32.mrb[0].mxu0
        %1980 = vmatprep.mubr.bf16.mxu0 0
        %1981 = vmatmul.mubr.bf16.gmra.mrb[0].mxu0 %v920
        %v1982 = vpop.f32.mrb[0].mxu0
        %v1983 = vadd.f32 0.0, %v1982
        %v1984 = vpop.f32.mrb[0].mxu0
        %v1985 = vpop.f32.mrb[0].mxu0
        %v1986 = vadd.f32 0.0, %v1985
        %v1987 = vpop.f32.mrb[0].mxu0
        %1988 = vmatprep.mubr.bf16.mxu0 0
        %1989 = vmatmul.mubr.bf16.gmra.mrb[0].mxu0 %v923
        %v1990 = vpop.f32.mrb[0].mxu0
        %v1991 = vadd.f32 0.0, %v1990
        %v1992 = vpop.f32.mrb[0].mxu0
        %v1993 = vpop.f32.mrb[0].mxu0
        %v1994 = vadd.f32 0.0, %v1993
        %v1995 = vpop.f32.mrb[0].mxu0
        %1996 = vmatprep.mubr.bf16.mxu0 0
        %1997 = vmatmul.mubr.bf16.gmra.mrb[0].mxu0 %v926
        %v1998 = vpop.f32.mrb[0].mxu0
        %v1999 = vadd.f32 0.0, %v1998
        %v2000 = vpop.f32.mrb[0].mxu0
        %v2001 = vpop.f32.mrb[0].mxu0
        %v2002 = vadd.f32 0.0, %v2001
        %v2003 = vpop.f32.mrb[0].mxu0
        %2004 = vmatprep.mubr.bf16.mxu0 0
        %2005 = vmatmul.mubr.bf16.gmra.mrb[0].mxu0 %v929
        %v2006 = vpop.f32.mrb[0].mxu0
        %v2007 = vadd.f32 0.0, %v2006
        %v2008 = vpop.f32.mrb[0].mxu0
        %v2009 = vpop.f32.mrb[0].mxu0
        %v2010 = vadd.f32 0.0, %v2009
        %v2011 = vpop.f32.mrb[0].mxu0
        %2012 = vmatprep.mubr.bf16.mxu0 0
        %2013 = vmatmul.mubr.bf16.gmra.mrb[0].mxu0 %v932
        %v2014 = vpop.f32.mrb[0].mxu0
        %v2015 = vadd.f32 0.0, %v2014
        %v2016 = vpop.f32.mrb[0].mxu0
        %v2017 = vpop.f32.mrb[0].mxu0
        %v2018 = vadd.f32 0.0, %v2017
        %v2019 = vpop.f32.mrb[0].mxu0
        %2020 = vmatprep.mubr.bf16.mxu0 0
        %2021 = vmatmul.mubr.bf16.gmra.mrb[0].mxu0 %v1863
        %v2022 = vpop.f32.mrb[0].mxu0
        %v2023 = vadd.f32 0.0, %v2022
        %v2024 = vpop.f32.mrb[0].mxu0
        %v2025 = vpop.f32.mrb[0].mxu0
        %v2026 = vadd.f32 0.0, %v2025
        %v2027 = vpop.f32.mrb[0].mxu0
        %2028 = vdwg.mxu0
        %v2029 = vadd.f32 %v1825, %v1903
        %v2030 = vadd.f32 %v1826, %v1906
        %v2031 = vadd.f32 %v1827, %v1911
        %v2032 = vadd.f32 %v1828, %v1914
        %v2033 = vadd.f32 %v1829, %v1919
        %v2034 = vadd.f32 %v1830, %v1922
        %v2035 = vadd.f32 %v1831, %v1927
        %v2036 = vadd.f32 %v1832, %v1930
        %v2037 = vadd.f32 %v1833, %v1935
        %v2038 = vadd.f32 %v1834, %v1938
        %v2039 = vadd.f32 %v1835, %v1943
        %v2040 = vadd.f32 %v1836, %v1946
        %v2041 = vadd.f32 %v1837, %v1951
        %v2042 = vadd.f32 %v1838, %v1954
        %v2043 = vadd.f32 %v1839, %v1959
        %v2044 = vadd.f32 %v1840, %v1962
        %v2045 = vadd.f32 %v1841, %v1967
        %v2046 = vadd.f32 %v1842, %v1970
        %v2047 = vadd.f32 %v1843, %v1975
        %v2048 = vadd.f32 %v1844, %v1978
        %v2049 = vadd.f32 %v1845, %v1983
        %v2050 = vadd.f32 %v1846, %v1986
        %v2051 = vadd.f32 %v1847, %v1991
        %v2052 = vadd.f32 %v1848, %v1994
        %v2053 = vadd.f32 %v1849, %v1999
        %v2054 = vadd.f32 %v1850, %v2002
        %v2055 = vadd.f32 %v1851, %v2007
        %v2056 = vadd.f32 %v1852, %v2010
        %v2057 = vadd.f32 %v1853, %v2015
        %v2058 = vadd.f32 %v1854, %v2018
        %v2059 = vadd.f32 %v1855, %v2023
        %v2060 = vadd.f32 %v1856, %v2026
        %s2061 = scalar_lea.vmem %s1, 10
        %v2062 = vld [vmem:[%s2061] sm:$0x3]
        %v2063 = vunpack.c.l.b16 %v796
        %v2064 = vunpack.c.l.b16 %v799
        %v2065 = vpack.c.b16 %v2064, %v2063
        %v2067 = vsel %vm885, %v2065, 0
        %v2070 = vsel %vm934, %v2062, 0
        %2072 = vmatprep.subr.bf16.mxu0 0
        %2073 = vmatpush1.bf16.msra.mxu0 %v2070
        %2074 = vmatprep.subr.bf16.mxu0 0
        %2075 = vmatpush1.bf16.msra.mxu0 0
        %2076 = vmatprep.subr.bf16.mxu0 0
        %2077 = vmatpush1.bf16.msra.mxu0 0
        %2078 = vmatprep.subr.bf16.mxu0 0
        %2079 = vmatpush1.bf16.msra.mxu0 0
        %2080 = vmatprep.subr.bf16.mxu0 0
        %2081 = vmatpush1.bf16.msra.mxu0 0
        %2082 = vmatprep.subr.bf16.mxu0 0
        %2083 = vmatpush1.bf16.msra.mxu0 0
        %2084 = vmatprep.subr.bf16.mxu0 0
        %2085 = vmatpush1.bf16.msra.mxu0 0
        %2086 = vmatprep.subr.bf16.mxu0 0
        %2087 = vmatpush1.bf16.msra.mxu0 0
        %2088 = vmatprep.subr.bf16.mxu0 0
        %2089 = vmatpush1.bf16.msra.mxu0 0
        %2090 = vmatprep.subr.bf16.mxu0 0
        %2091 = vmatpush1.bf16.msra.mxu0 0
        %2092 = vmatprep.subr.bf16.mxu0 0
        %2093 = vmatpush1.bf16.msra.mxu0 0
        %2094 = vmatprep.subr.bf16.mxu0 0
        %2095 = vmatpush1.bf16.msra.mxu0 0
        %2096 = vmatprep.subr.bf16.mxu0 0
        %2097 = vmatpush1.bf16.msra.mxu0 0
        %2098 = vmatprep.subr.bf16.mxu0 0
        %2099 = vmatpush1.bf16.msra.mxu0 0
        %2100 = vmatprep.subr.bf16.mxu0 0
        %2101 = vmatpush1.bf16.msra.mxu0 0
        %2102 = vmatprep.subr.bf16.mxu0 0
        %2103 = vmatpush1.bf16.msra.mxu0 0
        %2104 = vmatprep.mubr.bf16.mxu0 0
        %2105 = vmatmul.mubr.bf16.gmra.mrb[0].mxu0 %v1413
        %v2106 = vpop.f32.mrb[0].mxu0
        %v2107 = vadd.f32 0.0, %v2106
        %v2108 = vpop.f32.mrb[0].mxu0
        %v2109 = vpop.f32.mrb[0].mxu0
        %v2110 = vadd.f32 0.0, %v2109
        %v2111 = vpop.f32.mrb[0].mxu0
        %2112 = vmatprep.mubr.bf16.mxu0 0
        %2113 = vmatmul.mubr.bf16.gmra.mrb[0].mxu0 %v1416
        %v2114 = vpop.f32.mrb[0].mxu0
        %v2115 = vadd.f32 0.0, %v2114
        %v2116 = vpop.f32.mrb[0].mxu0
        %v2117 = vpop.f32.mrb[0].mxu0
        %v2118 = vadd.f32 0.0, %v2117
        %v2119 = vpop.f32.mrb[0].mxu0
        %2120 = vmatprep.mubr.bf16.mxu0 0
        %2121 = vmatmul.mubr.bf16.gmra.mrb[0].mxu0 %v1419
        %v2122 = vpop.f32.mrb[0].mxu0
        %v2123 = vadd.f32 0.0, %v2122
        %v2124 = vpop.f32.mrb[0].mxu0
        %v2125 = vpop.f32.mrb[0].mxu0
        %v2126 = vadd.f32 0.0, %v2125
        %v2127 = vpop.f32.mrb[0].mxu0
        %2128 = vmatprep.mubr.bf16.mxu0 0
        %2129 = vmatmul.mubr.bf16.gmra.mrb[0].mxu0 %v1422
        %v2130 = vpop.f32.mrb[0].mxu0
        %v2131 = vadd.f32 0.0, %v2130
        %v2132 = vpop.f32.mrb[0].mxu0
        %v2133 = vpop.f32.mrb[0].mxu0
        %v2134 = vadd.f32 0.0, %v2133
        %v2135 = vpop.f32.mrb[0].mxu0
        %2136 = vmatprep.mubr.bf16.mxu0 0
        %2137 = vmatmul.mubr.bf16.gmra.mrb[0].mxu0 %v1425
        %v2138 = vpop.f32.mrb[0].mxu0
        %v2139 = vadd.f32 0.0, %v2138
        %v2140 = vpop.f32.mrb[0].mxu0
        %v2141 = vpop.f32.mrb[0].mxu0
        %v2142 = vadd.f32 0.0, %v2141
        %v2143 = vpop.f32.mrb[0].mxu0
        %2144 = vmatprep.mubr.bf16.mxu0 0
        %2145 = vmatmul.mubr.bf16.gmra.mrb[0].mxu0 %v1428
        %v2146 = vpop.f32.mrb[0].mxu0
        %v2147 = vadd.f32 0.0, %v2146
        %v2148 = vpop.f32.mrb[0].mxu0
        %v2149 = vpop.f32.mrb[0].mxu0
        %v2150 = vadd.f32 0.0, %v2149
        %v2151 = vpop.f32.mrb[0].mxu0
        %2152 = vmatprep.mubr.bf16.mxu0 0
        %2153 = vmatmul.mubr.bf16.gmra.mrb[0].mxu0 %v1431
        %v2154 = vpop.f32.mrb[0].mxu0
        %v2155 = vadd.f32 0.0, %v2154
        %v2156 = vpop.f32.mrb[0].mxu0
        %v2157 = vpop.f32.mrb[0].mxu0
        %v2158 = vadd.f32 0.0, %v2157
        %v2159 = vpop.f32.mrb[0].mxu0
        %2160 = vmatprep.mubr.bf16.mxu0 0
        %2161 = vmatmul.mubr.bf16.gmra.mrb[0].mxu0 %v1434
        %v2162 = vpop.f32.mrb[0].mxu0
        %v2163 = vadd.f32 0.0, %v2162
        %v2164 = vpop.f32.mrb[0].mxu0
        %v2165 = vpop.f32.mrb[0].mxu0
        %v2166 = vadd.f32 0.0, %v2165
        %v2167 = vpop.f32.mrb[0].mxu0
        %2168 = vmatprep.mubr.bf16.mxu0 0
        %2169 = vmatmul.mubr.bf16.gmra.mrb[0].mxu0 %v1437
        %v2170 = vpop.f32.mrb[0].mxu0
        %v2171 = vadd.f32 0.0, %v2170
        %v2172 = vpop.f32.mrb[0].mxu0
        %v2173 = vpop.f32.mrb[0].mxu0
        %v2174 = vadd.f32 0.0, %v2173
        %v2175 = vpop.f32.mrb[0].mxu0
        %2176 = vmatprep.mubr.bf16.mxu0 0
        %2177 = vmatmul.mubr.bf16.gmra.mrb[0].mxu0 %v1440
        %v2178 = vpop.f32.mrb[0].mxu0
        %v2179 = vadd.f32 0.0, %v2178
        %v2180 = vpop.f32.mrb[0].mxu0
        %v2181 = vpop.f32.mrb[0].mxu0
        %v2182 = vadd.f32 0.0, %v2181
        %v2183 = vpop.f32.mrb[0].mxu0
        %2184 = vmatprep.mubr.bf16.mxu0 0
        %2185 = vmatmul.mubr.bf16.gmra.mrb[0].mxu0 %v1443
        %v2186 = vpop.f32.mrb[0].mxu0
        %v2187 = vadd.f32 0.0, %v2186
        %v2188 = vpop.f32.mrb[0].mxu0
        %v2189 = vpop.f32.mrb[0].mxu0
        %v2190 = vadd.f32 0.0, %v2189
        %v2191 = vpop.f32.mrb[0].mxu0
        %2192 = vmatprep.mubr.bf16.mxu0 0
        %2193 = vmatmul.mubr.bf16.gmra.mrb[0].mxu0 %v1446
        %v2194 = vpop.f32.mrb[0].mxu0
        %v2195 = vadd.f32 0.0, %v2194
        %v2196 = vpop.f32.mrb[0].mxu0
        %v2197 = vpop.f32.mrb[0].mxu0
        %v2198 = vadd.f32 0.0, %v2197
        %v2199 = vpop.f32.mrb[0].mxu0
        %2200 = vmatprep.mubr.bf16.mxu0 0
        %2201 = vmatmul.mubr.bf16.gmra.mrb[0].mxu0 %v1449
        %v2202 = vpop.f32.mrb[0].mxu0
        %v2203 = vadd.f32 0.0, %v2202
        %v2204 = vpop.f32.mrb[0].mxu0
        %v2205 = vpop.f32.mrb[0].mxu0
        %v2206 = vadd.f32 0.0, %v2205
        %v2207 = vpop.f32.mrb[0].mxu0
        %2208 = vmatprep.mubr.bf16.mxu0 0
        %2209 = vmatmul.mubr.bf16.gmra.mrb[0].mxu0 %v1452
        %v2210 = vpop.f32.mrb[0].mxu0
        %v2211 = vadd.f32 0.0, %v2210
        %v2212 = vpop.f32.mrb[0].mxu0
        %v2213 = vpop.f32.mrb[0].mxu0
        %v2214 = vadd.f32 0.0, %v2213
        %v2215 = vpop.f32.mrb[0].mxu0
        %2216 = vmatprep.mubr.bf16.mxu0 0
        %2217 = vmatmul.mubr.bf16.gmra.mrb[0].mxu0 %v1455
        %v2218 = vpop.f32.mrb[0].mxu0
        %v2219 = vadd.f32 0.0, %v2218
        %v2220 = vpop.f32.mrb[0].mxu0
        %v2221 = vpop.f32.mrb[0].mxu0
        %v2222 = vadd.f32 0.0, %v2221
        %v2223 = vpop.f32.mrb[0].mxu0
        %2224 = vmatprep.mubr.bf16.mxu0 0
        %2225 = vmatmul.mubr.bf16.gmra.mrb[0].mxu0 %v2067
        %v2226 = vpop.f32.mrb[0].mxu0
        %v2227 = vadd.f32 0.0, %v2226
        %v2228 = vpop.f32.mrb[0].mxu0
        %v2229 = vpop.f32.mrb[0].mxu0
        %v2230 = vadd.f32 0.0, %v2229
        %v2231 = vpop.f32.mrb[0].mxu0
        %2232 = vdwg.mxu0
        %v2233 = vadd.f32 %v2029, %v2107
        %v2234 = vadd.f32 %v2030, %v2110
        %v2235 = vadd.f32 %v2031, %v2115
        %v2236 = vadd.f32 %v2032, %v2118
        %v2237 = vadd.f32 %v2033, %v2123
        %v2238 = vadd.f32 %v2034, %v2126
        %v2239 = vadd.f32 %v2035, %v2131
        %v2240 = vadd.f32 %v2036, %v2134
        %v2241 = vadd.f32 %v2037, %v2139
        %v2242 = vadd.f32 %v2038, %v2142
        %v2243 = vadd.f32 %v2039, %v2147
        %v2244 = vadd.f32 %v2040, %v2150
        %v2245 = vadd.f32 %v2041, %v2155
        %v2246 = vadd.f32 %v2042, %v2158
        %v2247 = vadd.f32 %v2043, %v2163
        %v2248 = vadd.f32 %v2044, %v2166
        %v2249 = vadd.f32 %v2045, %v2171
        %v2250 = vadd.f32 %v2046, %v2174
        %v2251 = vadd.f32 %v2047, %v2179
        %v2252 = vadd.f32 %v2048, %v2182
        %v2253 = vadd.f32 %v2049, %v2187
        %v2254 = vadd.f32 %v2050, %v2190
        %v2255 = vadd.f32 %v2051, %v2195
        %v2256 = vadd.f32 %v2052, %v2198
        %v2257 = vadd.f32 %v2053, %v2203
        %v2258 = vadd.f32 %v2054, %v2206
        %v2259 = vadd.f32 %v2055, %v2211
        %v2260 = vadd.f32 %v2056, %v2214
        %v2261 = vadd.f32 %v2057, %v2219
        %v2262 = vadd.f32 %v2058, %v2222
        %v2263 = vadd.f32 %v2059, %v2227
        %v2264 = vadd.f32 %v2060, %v2230
        %s2265 = scalar_lea.vmem %s1, 12
        %v2266 = vld [vmem:[%s2265] sm:$0x3]
        %v2267 = vunpack.c.l.b16 %v213
        %v2268 = vunpack.c.l.b16 %v214
        %v2269 = vpack.c.b16 %v2268, %v2267
        %v2271 = vsel %vm885, %v2269, 0
        %v2274 = vsel %vm934, %v2266, 0
        %2276 = vmatprep.subr.bf16.mxu0 0
        %2277 = vmatpush1.bf16.msra.mxu0 %v2274
        %2278 = vmatprep.subr.bf16.mxu0 0
        %2279 = vmatpush1.bf16.msra.mxu0 0
        %2280 = vmatprep.subr.bf16.mxu0 0
        %2281 = vmatpush1.bf16.msra.mxu0 0
        %2282 = vmatprep.subr.bf16.mxu0 0
        %2283 = vmatpush1.bf16.msra.mxu0 0
        %2284 = vmatprep.subr.bf16.mxu0 0
        %2285 = vmatpush1.bf16.msra.mxu0 0
        %2286 = vmatprep.subr.bf16.mxu0 0
        %2287 = vmatpush1.bf16.msra.mxu0 0
        %2288 = vmatprep.subr.bf16.mxu0 0
        %2289 = vmatpush1.bf16.msra.mxu0 0
        %2290 = vmatprep.subr.bf16.mxu0 0
        %2291 = vmatpush1.bf16.msra.mxu0 0
        %2292 = vmatprep.subr.bf16.mxu0 0
        %2293 = vmatpush1.bf16.msra.mxu0 0
        %2294 = vmatprep.subr.bf16.mxu0 0
        %2295 = vmatpush1.bf16.msra.mxu0 0
        %2296 = vmatprep.subr.bf16.mxu0 0
        %2297 = vmatpush1.bf16.msra.mxu0 0
        %2298 = vmatprep.subr.bf16.mxu0 0
        %2299 = vmatpush1.bf16.msra.mxu0 0
        %2300 = vmatprep.subr.bf16.mxu0 0
        %2301 = vmatpush1.bf16.msra.mxu0 0
        %2302 = vmatprep.subr.bf16.mxu0 0
        %2303 = vmatpush1.bf16.msra.mxu0 0
        %2304 = vmatprep.subr.bf16.mxu0 0
        %2305 = vmatpush1.bf16.msra.mxu0 0
        %2306 = vmatprep.subr.bf16.mxu0 0
        %2307 = vmatpush1.bf16.msra.mxu0 0
        %2308 = vmatprep.mubr.bf16.mxu0 0
        %2309 = vmatmul.mubr.bf16.gmra.mrb[0].mxu0 %v1154
        %v2310 = vpop.f32.mrb[0].mxu0
        %v2311 = vadd.f32 0.0, %v2310
        %v2312 = vpop.f32.mrb[0].mxu0
        %v2313 = vpop.f32.mrb[0].mxu0
        %v2314 = vadd.f32 0.0, %v2313
        %v2315 = vpop.f32.mrb[0].mxu0
        %2316 = vmatprep.mubr.bf16.mxu0 0
        %2317 = vmatmul.mubr.bf16.gmra.mrb[0].mxu0 %v1157
        %v2318 = vpop.f32.mrb[0].mxu0
        %v2319 = vadd.f32 0.0, %v2318
        %v2320 = vpop.f32.mrb[0].mxu0
        %v2321 = vpop.f32.mrb[0].mxu0
        %v2322 = vadd.f32 0.0, %v2321
        %v2323 = vpop.f32.mrb[0].mxu0
        %2324 = vmatprep.mubr.bf16.mxu0 0
        %2325 = vmatmul.mubr.bf16.gmra.mrb[0].mxu0 %v1160
        %v2326 = vpop.f32.mrb[0].mxu0
        %v2327 = vadd.f32 0.0, %v2326
        %v2328 = vpop.f32.mrb[0].mxu0
        %v2329 = vpop.f32.mrb[0].mxu0
        %v2330 = vadd.f32 0.0, %v2329
        %v2331 = vpop.f32.mrb[0].mxu0
        %2332 = vmatprep.mubr.bf16.mxu0 0
        %2333 = vmatmul.mubr.bf16.gmra.mrb[0].mxu0 %v1163
        %v2334 = vpop.f32.mrb[0].mxu0
        %v2335 = vadd.f32 0.0, %v2334
        %v2336 = vpop.f32.mrb[0].mxu0
        %v2337 = vpop.f32.mrb[0].mxu0
        %v2338 = vadd.f32 0.0, %v2337
        %v2339 = vpop.f32.mrb[0].mxu0
        %2340 = vmatprep.mubr.bf16.mxu0 0
        %2341 = vmatmul.mubr.bf16.gmra.mrb[0].mxu0 %v1166
        %v2342 = vpop.f32.mrb[0].mxu0
        %v2343 = vadd.f32 0.0, %v2342
        %v2344 = vpop.f32.mrb[0].mxu0
        %v2345 = vpop.f32.mrb[0].mxu0
        %v2346 = vadd.f32 0.0, %v2345
        %v2347 = vpop.f32.mrb[0].mxu0
        %2348 = vmatprep.mubr.bf16.mxu0 0
        %2349 = vmatmul.mubr.bf16.gmra.mrb[0].mxu0 %v1169
        %v2350 = vpop.f32.mrb[0].mxu0
        %v2351 = vadd.f32 0.0, %v2350
        %v2352 = vpop.f32.mrb[0].mxu0
        %v2353 = vpop.f32.mrb[0].mxu0
        %v2354 = vadd.f32 0.0, %v2353
        %v2355 = vpop.f32.mrb[0].mxu0
        %2356 = vmatprep.mubr.bf16.mxu0 0
        %2357 = vmatmul.mubr.bf16.gmra.mrb[0].mxu0 %v1172
        %v2358 = vpop.f32.mrb[0].mxu0
        %v2359 = vadd.f32 0.0, %v2358
        %v2360 = vpop.f32.mrb[0].mxu0
        %v2361 = vpop.f32.mrb[0].mxu0
        %v2362 = vadd.f32 0.0, %v2361
        %v2363 = vpop.f32.mrb[0].mxu0
        %2364 = vmatprep.mubr.bf16.mxu0 0
        %2365 = vmatmul.mubr.bf16.gmra.mrb[0].mxu0 %v1175
        %v2366 = vpop.f32.mrb[0].mxu0
        %v2367 = vadd.f32 0.0, %v2366
        %v2368 = vpop.f32.mrb[0].mxu0
        %v2369 = vpop.f32.mrb[0].mxu0
        %v2370 = vadd.f32 0.0, %v2369
        %v2371 = vpop.f32.mrb[0].mxu0
        %2372 = vmatprep.mubr.bf16.mxu0 0
        %2373 = vmatmul.mubr.bf16.gmra.mrb[0].mxu0 %v1178
        %v2374 = vpop.f32.mrb[0].mxu0
        %v2375 = vadd.f32 0.0, %v2374
        %v2376 = vpop.f32.mrb[0].mxu0
        %v2377 = vpop.f32.mrb[0].mxu0
        %v2378 = vadd.f32 0.0, %v2377
        %v2379 = vpop.f32.mrb[0].mxu0
        %2380 = vmatprep.mubr.bf16.mxu0 0
        %2381 = vmatmul.mubr.bf16.gmra.mrb[0].mxu0 %v1181
        %v2382 = vpop.f32.mrb[0].mxu0
        %v2383 = vadd.f32 0.0, %v2382
        %v2384 = vpop.f32.mrb[0].mxu0
        %v2385 = vpop.f32.mrb[0].mxu0
        %v2386 = vadd.f32 0.0, %v2385
        %v2387 = vpop.f32.mrb[0].mxu0
        %2388 = vmatprep.mubr.bf16.mxu0 0
        %2389 = vmatmul.mubr.bf16.gmra.mrb[0].mxu0 %v1184
        %v2390 = vpop.f32.mrb[0].mxu0
        %v2391 = vadd.f32 0.0, %v2390
        %v2392 = vpop.f32.mrb[0].mxu0
        %v2393 = vpop.f32.mrb[0].mxu0
        %v2394 = vadd.f32 0.0, %v2393
        %v2395 = vpop.f32.mrb[0].mxu0
        %2396 = vmatprep.mubr.bf16.mxu0 0
        %2397 = vmatmul.mubr.bf16.gmra.mrb[0].mxu0 %v1187
        %v2398 = vpop.f32.mrb[0].mxu0
        %v2399 = vadd.f32 0.0, %v2398
        %v2400 = vpop.f32.mrb[0].mxu0
        %v2401 = vpop.f32.mrb[0].mxu0
        %v2402 = vadd.f32 0.0, %v2401
        %v2403 = vpop.f32.mrb[0].mxu0
        %2404 = vmatprep.mubr.bf16.mxu0 0
        %2405 = vmatmul.mubr.bf16.gmra.mrb[0].mxu0 %v1190
        %v2406 = vpop.f32.mrb[0].mxu0
        %v2407 = vadd.f32 0.0, %v2406
        %v2408 = vpop.f32.mrb[0].mxu0
        %v2409 = vpop.f32.mrb[0].mxu0
        %v2410 = vadd.f32 0.0, %v2409
        %v2411 = vpop.f32.mrb[0].mxu0
        %2412 = vmatprep.mubr.bf16.mxu0 0
        %2413 = vmatmul.mubr.bf16.gmra.mrb[0].mxu0 %v1193
        %v2414 = vpop.f32.mrb[0].mxu0
        %v2415 = vadd.f32 0.0, %v2414
        %v2416 = vpop.f32.mrb[0].mxu0
        %v2417 = vpop.f32.mrb[0].mxu0
        %v2418 = vadd.f32 0.0, %v2417
        %v2419 = vpop.f32.mrb[0].mxu0
        %2420 = vmatprep.mubr.bf16.mxu0 0
        %2421 = vmatmul.mubr.bf16.gmra.mrb[0].mxu0 %v1659
        %v2422 = vpop.f32.mrb[0].mxu0
        %v2423 = vadd.f32 0.0, %v2422
        %v2424 = vpop.f32.mrb[0].mxu0
        %v2425 = vpop.f32.mrb[0].mxu0
        %v2426 = vadd.f32 0.0, %v2425
        %v2427 = vpop.f32.mrb[0].mxu0
        %2428 = vmatprep.mubr.bf16.mxu0 0
        %2429 = vmatmul.mubr.bf16.gmra.mrb[0].mxu0 %v2271
        %v2430 = vpop.f32.mrb[0].mxu0
        %v2431 = vadd.f32 0.0, %v2430
        %v2432 = vpop.f32.mrb[0].mxu0
        %v2433 = vpop.f32.mrb[0].mxu0
        %v2434 = vadd.f32 0.0, %v2433
        %v2435 = vpop.f32.mrb[0].mxu0
        %2436 = vdwg.mxu0
        %v2437 = vadd.f32 %v2233, %v2311
        %v2438 = vadd.f32 %v2234, %v2314
        %v2439 = vadd.f32 %v2235, %v2319
        %v2440 = vadd.f32 %v2236, %v2322
        %v2441 = vadd.f32 %v2237, %v2327
        %v2442 = vadd.f32 %v2238, %v2330
        %v2443 = vadd.f32 %v2239, %v2335
        %v2444 = vadd.f32 %v2240, %v2338
        %v2445 = vadd.f32 %v2241, %v2343
        %v2446 = vadd.f32 %v2242, %v2346
        %v2447 = vadd.f32 %v2243, %v2351
        %v2448 = vadd.f32 %v2244, %v2354
        %v2449 = vadd.f32 %v2245, %v2359
        %v2450 = vadd.f32 %v2246, %v2362
        %v2451 = vadd.f32 %v2247, %v2367
        %v2452 = vadd.f32 %v2248, %v2370
        %v2453 = vadd.f32 %v2249, %v2375
        %v2454 = vadd.f32 %v2250, %v2378
        %v2455 = vadd.f32 %v2251, %v2383
        %v2456 = vadd.f32 %v2252, %v2386
        %v2457 = vadd.f32 %v2253, %v2391
        %v2458 = vadd.f32 %v2254, %v2394
        %v2459 = vadd.f32 %v2255, %v2399
        %v2460 = vadd.f32 %v2256, %v2402
        %v2461 = vadd.f32 %v2257, %v2407
        %v2462 = vadd.f32 %v2258, %v2410
        %v2463 = vadd.f32 %v2259, %v2415
        %v2464 = vadd.f32 %v2260, %v2418
        %v2465 = vadd.f32 %v2261, %v2423
        %v2466 = vadd.f32 %v2262, %v2426
        %v2467 = vadd.f32 %v2263, %v2431
        %v2468 = vadd.f32 %v2264, %v2434
        %s2469 = scalar_lea.vmem %s1, 14
        %v2470 = vld [vmem:[%s2469] sm:$0x3]
        %v2471 = vunpack.c.l.b16 %v813
        %v2472 = vunpack.c.l.b16 %v823
        %v2473 = vpack.c.b16 %v2472, %v2471
        %v2475 = vsel %vm885, %v2473, 0
        %v2478 = vsel %vm934, %v2470, 0
        %2480 = vmatprep.subr.bf16.mxu0 0
        %2481 = vmatpush1.bf16.msra.mxu0 %v2478
        %2482 = vmatprep.subr.bf16.mxu0 0
        %2483 = vmatpush1.bf16.msra.mxu0 0
        %2484 = vmatprep.subr.bf16.mxu0 0
        %2485 = vmatpush1.bf16.msra.mxu0 0
        %2486 = vmatprep.subr.bf16.mxu0 0
        %2487 = vmatpush1.bf16.msra.mxu0 0
        %2488 = vmatprep.subr.bf16.mxu0 0
        %2489 = vmatpush1.bf16.msra.mxu0 0
        %2490 = vmatprep.subr.bf16.mxu0 0
        %2491 = vmatpush1.bf16.msra.mxu0 0
        %2492 = vmatprep.subr.bf16.mxu0 0
        %2493 = vmatpush1.bf16.msra.mxu0 0
        %2494 = vmatprep.subr.bf16.mxu0 0
        %2495 = vmatpush1.bf16.msra.mxu0 0
        %2496 = vmatprep.subr.bf16.mxu0 0
        %2497 = vmatpush1.bf16.msra.mxu0 0
        %2498 = vmatprep.subr.bf16.mxu0 0
        %2499 = vmatpush1.bf16.msra.mxu0 0
        %2500 = vmatprep.subr.bf16.mxu0 0
        %2501 = vmatpush1.bf16.msra.mxu0 0
        %2502 = vmatprep.subr.bf16.mxu0 0
        %2503 = vmatpush1.bf16.msra.mxu0 0
        %2504 = vmatprep.subr.bf16.mxu0 0
        %2505 = vmatpush1.bf16.msra.mxu0 0
        %2506 = vmatprep.subr.bf16.mxu0 0
        %2507 = vmatpush1.bf16.msra.mxu0 0
        %2508 = vmatprep.subr.bf16.mxu0 0
        %2509 = vmatpush1.bf16.msra.mxu0 0
        %2510 = vmatprep.subr.bf16.mxu0 0
        %2511 = vmatpush1.bf16.msra.mxu0 0
        %2512 = vmatprep.mubr.bf16.mxu0 0
        %2513 = vmatmul.mubr.bf16.gmra.mrb[0].mxu0 %v893
        %v2514 = vpop.f32.mrb[0].mxu0
        %v2515 = vadd.f32 0.0, %v2514
        %v2516 = vpop.f32.mrb[0].mxu0
        %v2517 = vpop.f32.mrb[0].mxu0
        %v2518 = vadd.f32 0.0, %v2517
        %v2519 = vpop.f32.mrb[0].mxu0
        %2520 = vmatprep.mubr.bf16.mxu0 0
        %2521 = vmatmul.mubr.bf16.gmra.mrb[0].mxu0 %v896
        %v2522 = vpop.f32.mrb[0].mxu0
        %v2523 = vadd.f32 0.0, %v2522
        %v2524 = vpop.f32.mrb[0].mxu0
        %v2525 = vpop.f32.mrb[0].mxu0
        %v2526 = vadd.f32 0.0, %v2525
        %v2527 = vpop.f32.mrb[0].mxu0
        %2528 = vmatprep.mubr.bf16.mxu0 0
        %2529 = vmatmul.mubr.bf16.gmra.mrb[0].mxu0 %v899
        %v2530 = vpop.f32.mrb[0].mxu0
        %v2531 = vadd.f32 0.0, %v2530
        %v2532 = vpop.f32.mrb[0].mxu0
        %v2533 = vpop.f32.mrb[0].mxu0
        %v2534 = vadd.f32 0.0, %v2533
        %v2535 = vpop.f32.mrb[0].mxu0
        %2536 = vmatprep.mubr.bf16.mxu0 0
        %2537 = vmatmul.mubr.bf16.gmra.mrb[0].mxu0 %v902
        %v2538 = vpop.f32.mrb[0].mxu0
        %v2539 = vadd.f32 0.0, %v2538
        %v2540 = vpop.f32.mrb[0].mxu0
        %v2541 = vpop.f32.mrb[0].mxu0
        %v2542 = vadd.f32 0.0, %v2541
        %v2543 = vpop.f32.mrb[0].mxu0
        %2544 = vmatprep.mubr.bf16.mxu0 0
        %2545 = vmatmul.mubr.bf16.gmra.mrb[0].mxu0 %v905
        %v2546 = vpop.f32.mrb[0].mxu0
        %v2547 = vadd.f32 0.0, %v2546
        %v2548 = vpop.f32.mrb[0].mxu0
        %v2549 = vpop.f32.mrb[0].mxu0
        %v2550 = vadd.f32 0.0, %v2549
        %v2551 = vpop.f32.mrb[0].mxu0
        %2552 = vmatprep.mubr.bf16.mxu0 0
        %2553 = vmatmul.mubr.bf16.gmra.mrb[0].mxu0 %v908
        %v2554 = vpop.f32.mrb[0].mxu0
        %v2555 = vadd.f32 0.0, %v2554
        %v2556 = vpop.f32.mrb[0].mxu0
        %v2557 = vpop.f32.mrb[0].mxu0
        %v2558 = vadd.f32 0.0, %v2557
        %v2559 = vpop.f32.mrb[0].mxu0
        %2560 = vmatprep.mubr.bf16.mxu0 0
        %2561 = vmatmul.mubr.bf16.gmra.mrb[0].mxu0 %v911
        %v2562 = vpop.f32.mrb[0].mxu0
        %v2563 = vadd.f32 0.0, %v2562
        %v2564 = vpop.f32.mrb[0].mxu0
        %v2565 = vpop.f32.mrb[0].mxu0
        %v2566 = vadd.f32 0.0, %v2565
        %v2567 = vpop.f32.mrb[0].mxu0
        %2568 = vmatprep.mubr.bf16.mxu0 0
        %2569 = vmatmul.mubr.bf16.gmra.mrb[0].mxu0 %v914
        %v2570 = vpop.f32.mrb[0].mxu0
        %v2571 = vadd.f32 0.0, %v2570
        %v2572 = vpop.f32.mrb[0].mxu0
        %v2573 = vpop.f32.mrb[0].mxu0
        %v2574 = vadd.f32 0.0, %v2573
        %v2575 = vpop.f32.mrb[0].mxu0
        %2576 = vmatprep.mubr.bf16.mxu0 0
        %2577 = vmatmul.mubr.bf16.gmra.mrb[0].mxu0 %v917
        %v2578 = vpop.f32.mrb[0].mxu0
        %v2579 = vadd.f32 0.0, %v2578
        %v2580 = vpop.f32.mrb[0].mxu0
        %v2581 = vpop.f32.mrb[0].mxu0
        %v2582 = vadd.f32 0.0, %v2581
        %v2583 = vpop.f32.mrb[0].mxu0
        %2584 = vmatprep.mubr.bf16.mxu0 0
        %2585 = vmatmul.mubr.bf16.gmra.mrb[0].mxu0 %v920
        %v2586 = vpop.f32.mrb[0].mxu0
        %v2587 = vadd.f32 0.0, %v2586
        %v2588 = vpop.f32.mrb[0].mxu0
        %v2589 = vpop.f32.mrb[0].mxu0
        %v2590 = vadd.f32 0.0, %v2589
        %v2591 = vpop.f32.mrb[0].mxu0
        %2592 = vmatprep.mubr.bf16.mxu0 0
        %2593 = vmatmul.mubr.bf16.gmra.mrb[0].mxu0 %v923
        %v2594 = vpop.f32.mrb[0].mxu0
        %v2595 = vadd.f32 0.0, %v2594
        %v2596 = vpop.f32.mrb[0].mxu0
        %v2597 = vpop.f32.mrb[0].mxu0
        %v2598 = vadd.f32 0.0, %v2597
        %v2599 = vpop.f32.mrb[0].mxu0
        %2600 = vmatprep.mubr.bf16.mxu0 0
        %2601 = vmatmul.mubr.bf16.gmra.mrb[0].mxu0 %v926
        %v2602 = vpop.f32.mrb[0].mxu0
        %v2603 = vadd.f32 0.0, %v2602
        %v2604 = vpop.f32.mrb[0].mxu0
        %v2605 = vpop.f32.mrb[0].mxu0
        %v2606 = vadd.f32 0.0, %v2605
        %v2607 = vpop.f32.mrb[0].mxu0
        %2608 = vmatprep.mubr.bf16.mxu0 0
        %2609 = vmatmul.mubr.bf16.gmra.mrb[0].mxu0 %v929
        %v2610 = vpop.f32.mrb[0].mxu0
        %v2611 = vadd.f32 0.0, %v2610
        %v2612 = vpop.f32.mrb[0].mxu0
        %v2613 = vpop.f32.mrb[0].mxu0
        %v2614 = vadd.f32 0.0, %v2613
        %v2615 = vpop.f32.mrb[0].mxu0
        %2616 = vmatprep.mubr.bf16.mxu0 0
        %2617 = vmatmul.mubr.bf16.gmra.mrb[0].mxu0 %v932
        %v2618 = vpop.f32.mrb[0].mxu0
        %v2619 = vadd.f32 0.0, %v2618
        %v2620 = vpop.f32.mrb[0].mxu0
        %v2621 = vpop.f32.mrb[0].mxu0
        %v2622 = vadd.f32 0.0, %v2621
        %v2623 = vpop.f32.mrb[0].mxu0
        %2624 = vmatprep.mubr.bf16.mxu0 0
        %2625 = vmatmul.mubr.bf16.gmra.mrb[0].mxu0 %v1863
        %v2626 = vpop.f32.mrb[0].mxu0
        %v2627 = vadd.f32 0.0, %v2626
        %v2628 = vpop.f32.mrb[0].mxu0
        %v2629 = vpop.f32.mrb[0].mxu0
        %v2630 = vadd.f32 0.0, %v2629
        %v2631 = vpop.f32.mrb[0].mxu0
        %2632 = vmatprep.mubr.bf16.mxu0 0
        %2633 = vmatmul.mubr.bf16.gmra.mrb[0].mxu0 %v2475
        %v2634 = vpop.f32.mrb[0].mxu0
        %v2635 = vadd.f32 0.0, %v2634
        %v2636 = vpop.f32.mrb[0].mxu0
        %v2637 = vpop.f32.mrb[0].mxu0
        %v2638 = vadd.f32 0.0, %v2637
        %v2639 = vpop.f32.mrb[0].mxu0
        %2640 = vdwg.mxu0
        %v2641 = vadd.f32 %v2437, %v2515
        %v2642 = vadd.f32 %v2438, %v2518
        %v2643 = vadd.f32 %v2439, %v2523
        %v2644 = vadd.f32 %v2440, %v2526
        %v2645 = vadd.f32 %v2441, %v2531
        %v2646 = vadd.f32 %v2442, %v2534
        %v2647 = vadd.f32 %v2443, %v2539
        %v2648 = vadd.f32 %v2444, %v2542
        %v2649 = vadd.f32 %v2445, %v2547
        %v2650 = vadd.f32 %v2446, %v2550
        %v2651 = vadd.f32 %v2447, %v2555
        %v2652 = vadd.f32 %v2448, %v2558
        %v2653 = vadd.f32 %v2449, %v2563
        %v2654 = vadd.f32 %v2450, %v2566
        %v2655 = vadd.f32 %v2451, %v2571
        %v2656 = vadd.f32 %v2452, %v2574
        %v2657 = vadd.f32 %v2453, %v2579
        %v2658 = vadd.f32 %v2454, %v2582
        %v2659 = vadd.f32 %v2455, %v2587
        %v2660 = vadd.f32 %v2456, %v2590
        %v2661 = vadd.f32 %v2457, %v2595
        %v2662 = vadd.f32 %v2458, %v2598
        %v2663 = vadd.f32 %v2459, %v2603
        %v2664 = vadd.f32 %v2460, %v2606
        %v2665 = vadd.f32 %v2461, %v2611
        %v2666 = vadd.f32 %v2462, %v2614
        %v2667 = vadd.f32 %v2463, %v2619
        %v2668 = vadd.f32 %v2464, %v2622
        %v2669 = vadd.f32 %v2465, %v2627
        %v2670 = vadd.f32 %v2466, %v2630
        %v2671 = vadd.f32 %v2467, %v2635
        %v2672 = vadd.f32 %v2468, %v2638
        %s2673 = scalar_lea.vmem %s1, 16
        %v2674 = vld [vmem:[%s2673] sm:$0x3]
        %v2675 = vunpack.c.l.b16 %v830
        %v2676 = vunpack.c.l.b16 %v833
        %v2677 = vpack.c.b16 %v2676, %v2675
        %v2679 = vsel %vm885, %v2677, 0
        %v2682 = vsel %vm934, %v2674, 0
        %2684 = vmatprep.subr.bf16.mxu0 0
        %2685 = vmatpush1.bf16.msra.mxu0 %v2682
        %2686 = vmatprep.subr.bf16.mxu0 0
        %2687 = vmatpush1.bf16.msra.mxu0 0
        %2688 = vmatprep.subr.bf16.mxu0 0
        %2689 = vmatpush1.bf16.msra.mxu0 0
        %2690 = vmatprep.subr.bf16.mxu0 0
        %2691 = vmatpush1.bf16.msra.mxu0 0
        %2692 = vmatprep.subr.bf16.mxu0 0
        %2693 = vmatpush1.bf16.msra.mxu0 0
        %2694 = vmatprep.subr.bf16.mxu0 0
        %2695 = vmatpush1.bf16.msra.mxu0 0
        %2696 = vmatprep.subr.bf16.mxu0 0
        %2697 = vmatpush1.bf16.msra.mxu0 0
        %2698 = vmatprep.subr.bf16.mxu0 0
        %2699 = vmatpush1.bf16.msra.mxu0 0
        %2700 = vmatprep.subr.bf16.mxu0 0
        %2701 = vmatpush1.bf16.msra.mxu0 0
        %2702 = vmatprep.subr.bf16.mxu0 0
        %2703 = vmatpush1.bf16.msra.mxu0 0
        %2704 = vmatprep.subr.bf16.mxu0 0
        %2705 = vmatpush1.bf16.msra.mxu0 0
        %2706 = vmatprep.subr.bf16.mxu0 0
        %2707 = vmatpush1.bf16.msra.mxu0 0
        %2708 = vmatprep.subr.bf16.mxu0 0
        %2709 = vmatpush1.bf16.msra.mxu0 0
        %2710 = vmatprep.subr.bf16.mxu0 0
        %2711 = vmatpush1.bf16.msra.mxu0 0
        %2712 = vmatprep.subr.bf16.mxu0 0
        %2713 = vmatpush1.bf16.msra.mxu0 0
        %2714 = vmatprep.subr.bf16.mxu0 0
        %2715 = vmatpush1.bf16.msra.mxu0 0
        %2716 = vmatprep.mubr.bf16.mxu0 0
        %2717 = vmatmul.mubr.bf16.gmra.mrb[0].mxu0 %v1416
        %v2718 = vpop.f32.mrb[0].mxu0
        %v2719 = vadd.f32 0.0, %v2718
        %v2720 = vpop.f32.mrb[0].mxu0
        %v2721 = vpop.f32.mrb[0].mxu0
        %v2722 = vadd.f32 0.0, %v2721
        %v2723 = vpop.f32.mrb[0].mxu0
        %2724 = vmatprep.mubr.bf16.mxu0 0
        %2725 = vmatmul.mubr.bf16.gmra.mrb[0].mxu0 %v1419
        %v2726 = vpop.f32.mrb[0].mxu0
        %v2727 = vadd.f32 0.0, %v2726
        %v2728 = vpop.f32.mrb[0].mxu0
        %v2729 = vpop.f32.mrb[0].mxu0
        %v2730 = vadd.f32 0.0, %v2729
        %v2731 = vpop.f32.mrb[0].mxu0
        %2732 = vmatprep.mubr.bf16.mxu0 0
        %2733 = vmatmul.mubr.bf16.gmra.mrb[0].mxu0 %v1422
        %v2734 = vpop.f32.mrb[0].mxu0
        %v2735 = vadd.f32 0.0, %v2734
        %v2736 = vpop.f32.mrb[0].mxu0
        %v2737 = vpop.f32.mrb[0].mxu0
        %v2738 = vadd.f32 0.0, %v2737
        %v2739 = vpop.f32.mrb[0].mxu0
        %2740 = vmatprep.mubr.bf16.mxu0 0
        %2741 = vmatmul.mubr.bf16.gmra.mrb[0].mxu0 %v1425
        %v2742 = vpop.f32.mrb[0].mxu0
        %v2743 = vadd.f32 0.0, %v2742
        %v2744 = vpop.f32.mrb[0].mxu0
        %v2745 = vpop.f32.mrb[0].mxu0
        %v2746 = vadd.f32 0.0, %v2745
        %v2747 = vpop.f32.mrb[0].mxu0
        %2748 = vmatprep.mubr.bf16.mxu0 0
        %2749 = vmatmul.mubr.bf16.gmra.mrb[0].mxu0 %v1428
        %v2750 = vpop.f32.mrb[0].mxu0
        %v2751 = vadd.f32 0.0, %v2750
        %v2752 = vpop.f32.mrb[0].mxu0
        %v2753 = vpop.f32.mrb[0].mxu0
        %v2754 = vadd.f32 0.0, %v2753
        %v2755 = vpop.f32.mrb[0].mxu0
        %2756 = vmatprep.mubr.bf16.mxu0 0
        %2757 = vmatmul.mubr.bf16.gmra.mrb[0].mxu0 %v1431
        %v2758 = vpop.f32.mrb[0].mxu0
        %v2759 = vadd.f32 0.0, %v2758
        %v2760 = vpop.f32.mrb[0].mxu0
        %v2761 = vpop.f32.mrb[0].mxu0
        %v2762 = vadd.f32 0.0, %v2761
        %v2763 = vpop.f32.mrb[0].mxu0
        %2764 = vmatprep.mubr.bf16.mxu0 0
        %2765 = vmatmul.mubr.bf16.gmra.mrb[0].mxu0 %v1434
        %v2766 = vpop.f32.mrb[0].mxu0
        %v2767 = vadd.f32 0.0, %v2766
        %v2768 = vpop.f32.mrb[0].mxu0
        %v2769 = vpop.f32.mrb[0].mxu0
        %v2770 = vadd.f32 0.0, %v2769
        %v2771 = vpop.f32.mrb[0].mxu0
        %2772 = vmatprep.mubr.bf16.mxu0 0
        %2773 = vmatmul.mubr.bf16.gmra.mrb[0].mxu0 %v1437
        %v2774 = vpop.f32.mrb[0].mxu0
        %v2775 = vadd.f32 0.0, %v2774
        %v2776 = vpop.f32.mrb[0].mxu0
        %v2777 = vpop.f32.mrb[0].mxu0
        %v2778 = vadd.f32 0.0, %v2777
        %v2779 = vpop.f32.mrb[0].mxu0
        %2780 = vmatprep.mubr.bf16.mxu0 0
        %2781 = vmatmul.mubr.bf16.gmra.mrb[0].mxu0 %v1440
        %v2782 = vpop.f32.mrb[0].mxu0
        %v2783 = vadd.f32 0.0, %v2782
        %v2784 = vpop.f32.mrb[0].mxu0
        %v2785 = vpop.f32.mrb[0].mxu0
        %v2786 = vadd.f32 0.0, %v2785
        %v2787 = vpop.f32.mrb[0].mxu0
        %2788 = vmatprep.mubr.bf16.mxu0 0
        %2789 = vmatmul.mubr.bf16.gmra.mrb[0].mxu0 %v1443
        %v2790 = vpop.f32.mrb[0].mxu0
        %v2791 = vadd.f32 0.0, %v2790
        %v2792 = vpop.f32.mrb[0].mxu0
        %v2793 = vpop.f32.mrb[0].mxu0
        %v2794 = vadd.f32 0.0, %v2793
        %v2795 = vpop.f32.mrb[0].mxu0
        %2796 = vmatprep.mubr.bf16.mxu0 0
        %2797 = vmatmul.mubr.bf16.gmra.mrb[0].mxu0 %v1446
        %v2798 = vpop.f32.mrb[0].mxu0
        %v2799 = vadd.f32 0.0, %v2798
        %v2800 = vpop.f32.mrb[0].mxu0
        %v2801 = vpop.f32.mrb[0].mxu0
        %v2802 = vadd.f32 0.0, %v2801
        %v2803 = vpop.f32.mrb[0].mxu0
        %2804 = vmatprep.mubr.bf16.mxu0 0
        %2805 = vmatmul.mubr.bf16.gmra.mrb[0].mxu0 %v1449
        %v2806 = vpop.f32.mrb[0].mxu0
        %v2807 = vadd.f32 0.0, %v2806
        %v2808 = vpop.f32.mrb[0].mxu0
        %v2809 = vpop.f32.mrb[0].mxu0
        %v2810 = vadd.f32 0.0, %v2809
        %v2811 = vpop.f32.mrb[0].mxu0
        %2812 = vmatprep.mubr.bf16.mxu0 0
        %2813 = vmatmul.mubr.bf16.gmra.mrb[0].mxu0 %v1452
        %v2814 = vpop.f32.mrb[0].mxu0
        %v2815 = vadd.f32 0.0, %v2814
        %v2816 = vpop.f32.mrb[0].mxu0
        %v2817 = vpop.f32.mrb[0].mxu0
        %v2818 = vadd.f32 0.0, %v2817
        %v2819 = vpop.f32.mrb[0].mxu0
        %2820 = vmatprep.mubr.bf16.mxu0 0
        %2821 = vmatmul.mubr.bf16.gmra.mrb[0].mxu0 %v1455
        %v2822 = vpop.f32.mrb[0].mxu0
        %v2823 = vadd.f32 0.0, %v2822
        %v2824 = vpop.f32.mrb[0].mxu0
        %v2825 = vpop.f32.mrb[0].mxu0
        %v2826 = vadd.f32 0.0, %v2825
        %v2827 = vpop.f32.mrb[0].mxu0
        %2828 = vmatprep.mubr.bf16.mxu0 0
        %2829 = vmatmul.mubr.bf16.gmra.mrb[0].mxu0 %v2067
        %v2830 = vpop.f32.mrb[0].mxu0
        %v2831 = vadd.f32 0.0, %v2830
        %v2832 = vpop.f32.mrb[0].mxu0
        %v2833 = vpop.f32.mrb[0].mxu0
        %v2834 = vadd.f32 0.0, %v2833
        %v2835 = vpop.f32.mrb[0].mxu0
        %2836 = vmatprep.mubr.bf16.mxu0 0
        %2837 = vmatmul.mubr.bf16.gmra.mrb[0].mxu0 %v2679
        %v2838 = vpop.f32.mrb[0].mxu0
        %v2839 = vadd.f32 0.0, %v2838
        %v2840 = vpop.f32.mrb[0].mxu0
        %v2841 = vpop.f32.mrb[0].mxu0
        %v2842 = vadd.f32 0.0, %v2841
        %v2843 = vpop.f32.mrb[0].mxu0
        %2844 = vdwg.mxu0
        %v2845 = vadd.f32 %v2641, %v2719
        %v2846 = vadd.f32 %v2642, %v2722
        %v2847 = vadd.f32 %v2643, %v2727
        %v2848 = vadd.f32 %v2644, %v2730
        %v2849 = vadd.f32 %v2645, %v2735
        %v2850 = vadd.f32 %v2646, %v2738
        %v2851 = vadd.f32 %v2647, %v2743
        %v2852 = vadd.f32 %v2648, %v2746
        %v2853 = vadd.f32 %v2649, %v2751
        %v2854 = vadd.f32 %v2650, %v2754
        %v2855 = vadd.f32 %v2651, %v2759
        %v2856 = vadd.f32 %v2652, %v2762
        %v2857 = vadd.f32 %v2653, %v2767
        %v2858 = vadd.f32 %v2654, %v2770
        %v2859 = vadd.f32 %v2655, %v2775
        %v2860 = vadd.f32 %v2656, %v2778
        %v2861 = vadd.f32 %v2657, %v2783
        %v2862 = vadd.f32 %v2658, %v2786
        %v2863 = vadd.f32 %v2659, %v2791
        %v2864 = vadd.f32 %v2660, %v2794
        %v2865 = vadd.f32 %v2661, %v2799
        %v2866 = vadd.f32 %v2662, %v2802
        %v2867 = vadd.f32 %v2663, %v2807
        %v2868 = vadd.f32 %v2664, %v2810
        %v2869 = vadd.f32 %v2665, %v2815
        %v2870 = vadd.f32 %v2666, %v2818
        %v2871 = vadd.f32 %v2667, %v2823
        %v2872 = vadd.f32 %v2668, %v2826
        %v2873 = vadd.f32 %v2669, %v2831
        %v2874 = vadd.f32 %v2670, %v2834
        %v2875 = vadd.f32 %v2671, %v2839
        %v2876 = vadd.f32 %v2672, %v2842
        %v2877 = vpack.c.bf16 %v2846, %v2845
        %v2878 = vpack.c.bf16 %v2848, %v2847
        %v2879 = vpack.c.bf16 %v2850, %v2849
        %v2880 = vpack.c.bf16 %v2852, %v2851
        %v2881 = vpack.c.bf16 %v2854, %v2853
        %v2882 = vpack.c.bf16 %v2856, %v2855
        %v2883 = vpack.c.bf16 %v2858, %v2857
        %v2884 = vpack.c.bf16 %v2860, %v2859
        %v2885 = vpack.c.bf16 %v2862, %v2861
        %v2886 = vpack.c.bf16 %v2864, %v2863
        %v2887 = vpack.c.bf16 %v2866, %v2865
        %v2888 = vpack.c.bf16 %v2868, %v2867
        %v2889 = vpack.c.bf16 %v2870, %v2869
        %v2890 = vpack.c.bf16 %v2872, %v2871
        %v2891 = vpack.c.bf16 %v2874, %v2873
        %v2892 = vpack.c.bf16 %v2876, %v2875
        %v2909 = vunpack.c.l.b16 %v2877
        %v2910 = vunpack.c.h.b16 %v2877
        %v2911 = vunpack.c.l.b16 %v2878
        %v2912 = vunpack.c.h.b16 %v2878
        %v2913 = vunpack.c.l.b16 %v2879
        %v2914 = vunpack.c.h.b16 %v2879
        %v2915 = vunpack.c.l.b16 %v2880
        %v2916 = vunpack.c.h.b16 %v2880
        %v2917 = vunpack.c.l.b16 %v2881
        %v2918 = vunpack.c.h.b16 %v2881
        %v2919 = vunpack.c.l.b16 %v2882
        %v2920 = vunpack.c.h.b16 %v2882
        %v2921 = vunpack.c.l.b16 %v2883
        %v2922 = vunpack.c.h.b16 %v2883
        %v2923 = vunpack.c.l.b16 %v2884
        %v2924 = vunpack.c.h.b16 %v2884
        %v2925 = vunpack.c.l.b16 %v2885
        %v2926 = vunpack.c.h.b16 %v2885
        %v2927 = vunpack.c.l.b16 %v2886
        %v2928 = vunpack.c.h.b16 %v2886
        %v2929 = vunpack.c.l.b16 %v2887
        %v2930 = vunpack.c.h.b16 %v2887
        %v2931 = vunpack.c.l.b16 %v2888
        %v2932 = vunpack.c.h.b16 %v2888
        %v2933 = vunpack.c.l.b16 %v2889
        %v2934 = vunpack.c.h.b16 %v2889
        %v2935 = vunpack.c.l.b16 %v2890
        %v2936 = vunpack.c.h.b16 %v2890
        %v2937 = vunpack.c.l.b16 %v2891
        %v2938 = vunpack.c.h.b16 %v2891
        %v2939 = vunpack.c.l.b16 %v2892
        %v2940 = vunpack.c.h.b16 %v2892
        %v2941 = vpack.c.b16 %v2909, %v2909
        %v2942 = vpack.c.b16 %v2910, %v2910
        %v2943 = vpack.c.b16 %v2911, %v2911
        %v2944 = vpack.c.b16 %v2912, %v2912
        %v2945 = vpack.c.b16 %v2913, %v2913
        %v2946 = vpack.c.b16 %v2914, %v2914
        %v2947 = vpack.c.b16 %v2915, %v2915
        %v2948 = vpack.c.b16 %v2916, %v2916
        %v2949 = vpack.c.b16 %v2917, %v2917
        %v2950 = vpack.c.b16 %v2918, %v2918
        %v2951 = vpack.c.b16 %v2919, %v2919
        %v2952 = vpack.c.b16 %v2920, %v2920
        %v2953 = vpack.c.b16 %v2921, %v2921
        %v2954 = vpack.c.b16 %v2922, %v2922
        %v2955 = vpack.c.b16 %v2923, %v2923
        %v2956 = vpack.c.b16 %v2924, %v2924
        %v2957 = vpack.c.b16 %v2925, %v2925
        %v2958 = vpack.c.b16 %v2926, %v2926
        %v2959 = vpack.c.b16 %v2927, %v2927
        %v2960 = vpack.c.b16 %v2928, %v2928
        %v2961 = vpack.c.b16 %v2929, %v2929
        %v2962 = vpack.c.b16 %v2930, %v2930
        %v2963 = vpack.c.b16 %v2931, %v2931
        %v2964 = vpack.c.b16 %v2932, %v2932
        %v2965 = vpack.c.b16 %v2933, %v2933
        %v2966 = vpack.c.b16 %v2934, %v2934
        %v2967 = vpack.c.b16 %v2935, %v2935
        %v2968 = vpack.c.b16 %v2936, %v2936
        %v2969 = vpack.c.b16 %v2937, %v2937
        %v2970 = vpack.c.b16 %v2938, %v2938
        %v2971 = vpack.c.b16 %v2939, %v2939
        %v2972 = vpack.c.b16 %v2940, %v2940
        %3005 = vst [vmem:[%s150] sm:$0xf] %v2941
        %3006 = vst [vmem:[%s150 + $0x4] sm:$0xf] %v2942
        %3007 = vst [vmem:[%s150 + $0x8] sm:$0xf] %v2943
        %3008 = vst [vmem:[%s150 + $0xc] sm:$0xf] %v2944
        %3009 = vst [vmem:[%s150 + $0x10] sm:$0xf] %v2945
        %3010 = vst [vmem:[%s150 + $0x14] sm:$0xf] %v2946
        %3011 = vst [vmem:[%s150 + $0x18] sm:$0xf] %v2947
        %3012 = vst [vmem:[%s150 + $0x1c] sm:$0xf] %v2948
        %3013 = vst [vmem:[%s150 + $0x20] sm:$0xf] %v2949
        %3014 = vst [vmem:[%s150 + $0x24] sm:$0xf] %v2950
        %3015 = vst [vmem:[%s150 + $0x28] sm:$0xf] %v2951
        %3016 = vst [vmem:[%s150 + $0x2c] sm:$0xf] %v2952
        %3017 = vst [vmem:[%s150 + $0x30] sm:$0xf] %v2953
        %3018 = vst [vmem:[%s150 + $0x34] sm:$0xf] %v2954
        %3019 = vst [vmem:[%s150 + $0x38] sm:$0xf] %v2955
        %3020 = vst [vmem:[%s150 + $0x3c] sm:$0xf] %v2956
        %3021 = vst [vmem:[%s150 + $0x40] sm:$0xf] %v2957
        %3022 = vst [vmem:[%s150 + $0x44] sm:$0xf] %v2958
        %3023 = vst [vmem:[%s150 + $0x48] sm:$0xf] %v2959
        %3024 = vst [vmem:[%s150 + $0x4c] sm:$0xf] %v2960
        %3025 = vst [vmem:[%s150 + $0x50] sm:$0xf] %v2961
        %3026 = vst [vmem:[%s150 + $0x54] sm:$0xf] %v2962
        %3027 = vst [vmem:[%s150 + $0x58] sm:$0xf] %v2963
        %3028 = vst [vmem:[%s150 + $0x5c] sm:$0xf] %v2964
        %3029 = vst [vmem:[%s150 + $0x60] sm:$0xf] %v2965
        %3030 = vst [vmem:[%s150 + $0x64] sm:$0xf] %v2966
        %3031 = vst [vmem:[%s150 + $0x68] sm:$0xf] %v2967
        %3032 = vst [vmem:[%s150 + $0x6c] sm:$0xf] %v2968
        %3033 = vst [vmem:[%s150 + $0x70] sm:$0xf] %v2969
        %3034 = vst [vmem:[%s150 + $0x74] sm:$0xf] %v2970
        %3035 = vst [vmem:[%s150 + $0x78] sm:$0xf] %v2971
        %3036 = vst [vmem:[%s150 + $0x7c] sm:$0xf] %v2972
        %s3037 = sand.u32 %s85, 1
        %s3038 = scalar_lea.sflag [#allocation3], %s3037
        %s3039 = sand.u32 %s85, 1
        %s3040 = smul.addr %s3039, 128
        %s3041 = scalar_lea.vmem [#allocation2], %s3040
        // Predicated region
        $region29: #{tpu_custom_call.1} parent=27 // pred_check
          %p3042 = pneg %p95
        $region30: #{tpu_custom_call.1} parent=27 // pred_check_branch
          %3044 = sbr.rel (%p3042) target = $region32
        $region31: #{tpu_custom_call.1} parent=27 // pred_region
          %s3045 = smul.u32 32, %s21
          %s3047 = ssub.s32 2048, 2048
          %3048 = vsyncadd %s3038, %s3047
          %s3049 = smul.addr %s20, 32
          %s3050 = sadd.s32 %s3045, %s3049
          %s3051 = smul.addr %s3050, 64
          %s3052 = scalar_lea.hbm %s2, %s3051
          %s3053 = sshll.u32 %s3041, 4
          %s3054 = int_to_ptr.vmem [resolvable:$true] %s3053
          %3059 = dma.vmem_to_hbm [thread:$0]  %s3054, 2048, %s3052, %s3038, 64, 64, 4
        $region32: #{tpu_custom_call.1} parent=27 // pred_fallthru
          _
      $region28: #{tpu_custom_call.1} parent=5 // pred_fallthru
        _
      %p3060 = scmp.le.s32.totalorder 2, %s11
      // Predicated region
      $region33: #{tpu_custom_call.1} parent=5 // pred_check
        %p3061 = pneg %p3060
      $region34: #{tpu_custom_call.1} parent=5 // pred_check_branch
        %3063 = sbr.rel (%p3061) target = $region36
      $region35: #{tpu_custom_call.1} parent=5 // pred_region
        %s3064 = ssub.s32 %s11, 2
        // Predicated region
        $region37: #{tpu_custom_call.1} parent=35 // pred_check
          %p3065 = pneg %p101
        $region38: #{tpu_custom_call.1} parent=35 // pred_check_branch
          %3067 = sbr.rel (%p3065) target = $region40
        $region39: #{tpu_custom_call.1} parent=35 // pred_region
          %s3068 = sand.u32 %s86, 1
          %s3069 = scalar_lea.sflag [#allocation3], %s3068
          %s3070 = sand.u32 %s86, 1
          %s3071 = smul.addr %s3070, 128
          %s3072 = scalar_lea.vmem [#allocation2], %s3071
          %3073 = dma.done %s3069, 2048
        $region40: #{tpu_custom_call.1} parent=35 // pred_fallthru
          _
      $region36: #{tpu_custom_call.1} parent=5 // pred_fallthru
        _
    $region6: #{tpu_custom_call.1} parent=1 // loop_footer
      %s15 = sadd.s32 1, %s11
    $region7: #{tpu_custom_call.1} parent=1 // loop_footer_branch
      %10 = sbr.rel target = $region3
    $region8: #{tpu_custom_call.1} parent=1 // loop_exit
      _
    %3074 = vsyncpa [#allocation3], 1
    %s3075 = scalar_lea.sflag [#allocation3], 1
    %3076 = vsyncpa %s3075, 1

</llo_original>
